<compile_context>
chip_gen: v6e
topology: v6e:2x2x1
jax: 0.10.0
libtpu: 0.0.40
codegen_flags: <defaults>
</compile_context>

<pallas_src>
import numpy as np

import jax
import jax.numpy as jnp
from jax import lax
from jax.experimental import pallas as pl
from jax.experimental.pallas import tpu as pltpu

TB_MAX = 128          # preferred images per grid step (multiple of 8)
MATMUL_DTYPE = jnp.bfloat16   # set to jnp.float32 for ~2e-3 agreement w/ ref


def _round_up(n, m):
    return -(-n // m) * m


def _choose_tb(batch):
    """Pick the batch tile: big for MXU efficiency, but keep >= 2 grid steps
    when the batch allows it so ("parallel",) can shard over both v7x TCs."""
    if batch >= 2 * TB_MAX:
        return TB_MAX
    return max(8, min(TB_MAX, _round_up(_round_up(batch, 2) // 2, 8)))


# ------------------------------ fused kernel ------------------------------- #

def _net_kernel(x_ref, w1lo_ref, w1hi_ref, b1_ref, w2_ref, b2_ref,
                wf1_ref, bf1_ref, wf2_ref, bf2_ref, o_ref):
    """Whole Net forward for one tile of TB images, entirely in VMEM.

    x_ref   : (7*TB, 128) bf16, row = hh*TB + b, lane = r*32 + w,
              holding image pixel [b, 4*hh + r, w]  (w in 28..31 is zero pad).
    w1lo_ref: (128, 384) conv1 weights for input rows 4j+r (r = 0..3)
    w1hi_ref: (128, 384) conv1 weights for input rows 4(j+1)+r
              output lane = p*192 + xp*96 + q*48 + x1*4 + o
              (conv row y = 4j + 2q + p, conv col x = 2*x1 + xp)
    w2_ref  : (3, 96, 160) conv2 weights per pooled1 row-block offset t,
              K lane = q*48 + x1*4 + ci, out lane = p2*80 + xp2*40 + x2h*10 + o2
    wf1_ref : (160, 128) fc1 weight, rows = y2h*40 + x2h*10 + o2 (cols padded)
    wf2_ref : (128, 128) fc2 weight padded from (100, 10)
    o_ref   : (TB, 128)  f32 logits (cols >= 10 zero), sliced outside.
    """
    f32 = jnp.float32
    TBk = o_ref.shape[0]

    x_lo = x_ref[0:6 * TBk, :]       # input row blocks hh = j   (j = 0..5)
    x_hi = x_ref[TBk:7 * TBk, :]     # input row blocks hh = j+1

    # ---- conv_1 (+bias, ReLU) and 2x2 max-pool, all (q,p) stacked along N ----
    acc1 = (jnp.dot(x_lo, w1lo_ref[...], preferred_element_type=f32)
            + jnp.dot(x_hi, w1hi_ref[...], preferred_element_type=f32))
    pre1 = jnp.maximum(acc1 + b1_ref[...], 0.0)            # (6*TB, 384)
    m1 = jnp.maximum(pre1[:, 0:192], pre1[:, 192:384])     # pool over y-parity p
    # pooled1: row j*TB+b <-> pooled row 2j+q, lane = q*48 + x1*4 + c
    p1 = jnp.maximum(m1[:, 0:96], m1[:, 96:192]).astype(MATMUL_DTYPE)

    # ---- conv_2 (+bias, ReLU) and 2x2 max-pool; kh folded into K, p2 into N --
    acc2 = None
    for t in range(3):                                     # pooled1 row offsets
        s_t = p1[t * TBk:(t + 4) * TBk, :]                 # (4*TB, 96)
        d = jnp.dot(s_t, w2_ref[t], preferred_element_type=f32)
        acc2 = d if acc2 is None else acc2 + d
    pre2 = jnp.maximum(acc2 + b2_ref[...], 0.0)            # (4*TB, 160)
    m2 = jnp.maximum(pre2[:, 0:80], pre2[:, 80:160])       # pool over p2
    # pooled2: row y2h*TB+b, lane = x2h*10 + o2
    p2 = jnp.maximum(m2[:, 0:40], m2[:, 40:80]).astype(MATMUL_DTYPE)

    # ---- fc_1 (NCHW flatten folded into the weight rows) + ReLU --------------
    hacc = None
    for y in range(4):                                     # sum over pooled rows
        d = jnp.dot(p2[y * TBk:(y + 1) * TBk, :],
                    wf1_ref[y * 40:(y + 1) * 40, :],
                    preferred_element_type=f32)
        hacc = d if hacc is None else hacc + d
    h = jnp.maximum(hacc + bf1_ref[...], 0.0).astype(MATMUL_DTYPE)   # (TB, 128)

    # ---- fc_2 (lane-dense 128-wide logits) -----------------------------------
    o_ref[...] = (jnp.dot(h, wf2_ref[...], preferred_element_type=f32)
                  + bf2_ref[...]).astype(o_ref.dtype)


# --------------------------- parameter repacking ---------------------------- #

def _pack_params(params):
    """One-time host-side repacking of PyTorch-layout params into the stacked /
    banded / zero-padded matrices the fused kernel consumes."""
    c1w, c1b, c2w, c2b, f1w, f1b, f2w, f2b = [np.asarray(p, np.float32) for p in params]

    # conv_1: K lane = r*32 + w_in (r = input row mod 4), N = p*192+xp*96+q*48+x1*4+o
    w1lo = np.zeros((128, 384), np.float32)
    w1hi = np.zeros((128, 384), np.float32)
    for q in range(2):
        for p in range(2):
            s0 = 2 * q + p
            for xp in range(2):
                for x1 in range(12):
                    for o in range(4):
                        lane = p * 192 + xp * 96 + q * 48 + x1 * 4 + o
                        xcol = 2 * x1 + xp
                        for kh in range(5):
                            s = s0 + kh
                            dst = w1lo if s <= 3 else w1hi
                            for kw in range(5):
                                dst[(s % 4) * 32 + xcol + kw, lane] = c1w[o, 0, kh, kw]
    b1e = np.tile(c1b, 96).reshape(1, 384)

    # conv_2: 3 K-blocks (pooled1 row offset t), K lane = q*48 + x1*4 + ci,
    #         N lane = p2*80 + xp2*40 + x2h*10 + o2
    w2s = np.zeros((3, 96, 160), np.float32)
    for p2 in range(2):
        for xp2 in range(2):
            for x2h in range(4):
                for o2 in range(10):
                    lane = p2 * 80 + xp2 * 40 + x2h * 10 + o2
                    x2 = 2 * x2h + xp2
                    for ci in range(4):
                        for kh in range(5):
                            u = p2 + kh
                            t, q1 = u // 2, u % 2
                            for kw in range(5):
                                w2s[t, q1 * 48 + (x2 + kw) * 4 + ci, lane] = \
                                    c2w[o2, ci, kh, kw]
    b2e = np.tile(c2b, 16).reshape(1, 160)

    # fc_1: fold torch's NCHW flatten (o2*16 + y2h*4 + x2h) into the row order
    # (y2h, x2h, o2) the kernel produces; pad N 100 -> 128.
    wf1p = np.zeros((160, 128), np.float32)
    for y2h in range(4):
        for x2h in range(4):
            for o2 in range(10):
                wf1p[y2h * 40 + x2h * 10 + o2, :100] = f1w[:, o2 * 16 + y2h * 4 + x2h]
    bf1p = np.zeros((1, 128), np.float32)
    bf1p[0, :100] = f1b

    # fc_2: zero-pad (100, 10) -> (128, 128) so both K and N are lane-dense.
    wf2p = np.zeros((128, 128), np.float32)
    wf2p[:100, :10] = f2w.T
    bf2p = np.zeros((1, 128), np.float32)
    bf2p[0, :10] = f2b

    md = MATMUL_DTYPE
    return (jnp.asarray(w1lo, md), jnp.asarray(w1hi, md), jnp.asarray(b1e),
            jnp.asarray(w2s, md), jnp.asarray(b2e),
            jnp.asarray(wf1p, md), jnp.asarray(bf1p),
            jnp.asarray(wf2p, md), jnp.asarray(bf2p))


# ------------------------------- forward pass ------------------------------- #

@jax.jit
def _net_forward_packed(x_nchw, packed):
    w1lo, w1hi, b1e, w2s, b2e, wf1p, bf1p, wf2p, bf2p = packed
    B = x_nchw.shape[0]
    tb = _choose_tb(B)
    G = pl.cdiv(B, tb)
    Bp = G * tb

    # Layout plumbing on the raw 28x28 input (single cheap XLA transpose):
    # cast to bf16 (halves the bytes moved), pad batch -> Bp and width 28 -> 32,
    # pack rows by (row mod 4) into the lane dim (free reshape: lane = r*32+w),
    # and order rows (row//4)-major, image-minor so every slab the kernel reads
    # is a contiguous, 8-aligned, 128-lane-dense slice.
    x = x_nchw[:, 0].astype(MATMUL_DTYPE)                   # (B, 28, 28)
    x = jnp.pad(x, ((0, Bp - B), (0, 0), (0, 4)))           # (Bp, 28, 32)
    x = x.reshape(G, tb, 7, 128)                            # lane = r*32 + w
    x = jnp.transpose(x, (0, 2, 1, 3))                      # (G, 7, tb, 128)
    x2d = x.reshape(G * 7 * tb, 128)

    flops_per_img = 2 * (2 * 6 * 128 * 384 + 3 * 4 * 96 * 160
                         + 4 * 40 * 128 + 128 * 128)
    weight_bytes = ((2 * 128 * 384 + 3 * 96 * 160 + 160 * 128 + 128 * 128)
                    * jnp.dtype(MATMUL_DTYPE).itemsize
                    + (384 + 160 + 128 + 128) * 4)
    cost = pl.CostEstimate(
        flops=int(Bp * flops_per_img),
        transcendentals=0,
        bytes_accessed=int(Bp * (7 * 128 * jnp.dtype(MATMUL_DTYPE).itemsize
                                 + 128 * 4) + G * weight_bytes))

    out = pl.pallas_call(
        _net_kernel,
        out_shape=jax.ShapeDtypeStruct((Bp, 128), jnp.float32),
        grid=(G,),
        in_specs=[
            pl.BlockSpec((7 * tb, 128), lambda i: (i, 0)),
            pl.BlockSpec((128, 384), lambda i: (0, 0)),
            pl.BlockSpec((128, 384), lambda i: (0, 0)),
            pl.BlockSpec((1, 384), lambda i: (0, 0)),
            pl.BlockSpec((3, 96, 160), lambda i: (0, 0, 0)),
            pl.BlockSpec((1, 160), lambda i: (0, 0)),
            pl.BlockSpec((160, 128), lambda i: (0, 0)),
            pl.BlockSpec((1, 128), lambda i: (0, 0)),
            pl.BlockSpec((128, 128), lambda i: (0, 0)),
            pl.BlockSpec((1, 128), lambda i: (0, 0)),
        ],
        out_specs=pl.BlockSpec((tb, 128), lambda i: (i, 0)),
        compiler_params=pltpu.CompilerParams(
            dimension_semantics=("parallel",),
            vmem_limit_bytes=32 * 1024 * 1024),
        cost_estimate=cost,
    )(x2d, w1lo, w1hi, b1e, w2s, b2e, wf1p, bf1p, wf2p, bf2p)

    return out[:B, :10]


def net_forward(x_nchw, params):
    """Forward pass matching PyTorch Net.forward (params in PyTorch layout)."""
    return _net_forward_packed(x_nchw, _pack_params(params))


# ----------------------------- init & reference ----------------------------- #

def init_params(key):
    """Deterministic init matching PyTorch default U(-1/sqrt(fan_in), +)."""
    ks = jax.random.split(key, 8)

    def u(k, shape, fan_in):
        bound = 1.0 / jnp.sqrt(jnp.float32(fan_in))
        return jax.random.uniform(k, shape, jnp.float32, -bound, bound)

    c1w = u(ks[0], (4, 1, 5, 5), 1 * 5 * 5)     # conv_1.weight (OIHW)
    c1b = u(ks[1], (4,), 1 * 5 * 5)             # conv_1.bias
    c2w = u(ks[2], (10, 4, 5, 5), 4 * 5 * 5)    # conv_2.weight
    c2b = u(ks[3], (10,), 4 * 5 * 5)            # conv_2.bias
    f1w = u(ks[4], (100, 160), 160)             # fc_1.weight (out, in)
    f1b = u(ks[5], (100,), 160)                 # fc_1.bias
    f2w = u(ks[6], (10, 100), 100)              # fc_2.weight
    f2b = u(ks[7], (10,), 100)                  # fc_2.bias
    return (c1w, c1b, c2w, c2b, f1w, f1b, f2w, f2b)


def net_forward_ref(x, params):
    """Pure-JAX f32 reference mirroring the PyTorch module exactly (NCHW)."""
    c1w, c1b, c2w, c2b, f1w, f1b, f2w, f2b = params
    dn = ('NCHW', 'OIHW', 'NCHW')
    y = lax.conv_general_dilated(x, c1w, (1, 1), 'VALID', dimension_numbers=dn)
    y = jax.nn.relu(y + c1b.reshape(1, -1, 1, 1))
    y = lax.reduce_window(y, -jnp.inf, lax.max, (1, 1, 2, 2), (1, 1, 2, 2), 'VALID')
    y = lax.conv_general_dilated(y, c2w, (1, 1), 'VALID', dimension_numbers=dn)
    y = jax.nn.relu(y + c2b.reshape(1, -1, 1, 1))
    y = lax.reduce_window(y, -jnp.inf, lax.max, (1, 1, 2, 2), (1, 1, 2, 2), 'VALID')
    y = y.reshape(y.shape[0], -1)
    y = jax.nn.relu(y @ f1w.T + f1b)
    return y @ f2w.T + f2b


if __name__ == "__main__":
    key = jax.random.PRNGKey(0)
    pkey, xkey = jax.random.split(key)
    params = init_params(pkey)
    packed = _pack_params(params)

    # Tolerance note: matmul operands are bf16 (f32 accumulation); ~2e-2 covers
    # the bf16 rounding vs the f32 reference. Set MATMUL_DTYPE=float32 for ~2e-3.
    TOL = dict(atol=2e-2, rtol=2e-2)

    # Small-batch correctness check (28x28 input is fixed by the 4*4*10 flatten).
    x_small = jax.random.normal(xkey, (2, 1, 28, 28), jnp.float32)
    out_small = jax.block_until_ready(_net_forward_packed(x_small, packed))
    ref_small = net_forward_ref(x_small, params)
    assert out_small.shape == (2, 10), out_small.shape
    assert jnp.allclose(out_small, ref_small, **TOL), "mismatch (batch 2)"

    # Larger batch: exercises TB=128 tiles and a 2-step "parallel" grid.
    x_big = jax.random.normal(jax.random.fold_in(xkey, 1), (256, 1, 28, 28),
                              jnp.float32)
    out_big = jax.block_until_ready(_net_forward_packed(x_big, packed))
    ref_big = net_forward_ref(x_big, params)
    assert out_big.shape == (256, 10), out_big.shape
    assert jnp.allclose(out_big, ref_big, **TOL), "mismatch (batch 256)"

    print("KERNEL_OK")
</pallas_src>

<mosaic_0001>
module attributes {stable_mosaic.version = 11 : i64} {
  func.func @_net_kernel(%arg0: i32, %arg1: memref<56x128xbf16, #tpu.memory_space<vmem>>, %arg2: memref<128x384xbf16, #tpu.memory_space<vmem>>, %arg3: memref<128x384xbf16, #tpu.memory_space<vmem>>, %arg4: memref<1x384xf32, #tpu.memory_space<vmem>>, %arg5: memref<3x96x160xbf16, #tpu.memory_space<vmem>>, %arg6: memref<1x160xf32, #tpu.memory_space<vmem>>, %arg7: memref<160x128xbf16, #tpu.memory_space<vmem>>, %arg8: memref<1x128xf32, #tpu.memory_space<vmem>>, %arg9: memref<128x128xbf16, #tpu.memory_space<vmem>>, %arg10: memref<1x128xf32, #tpu.memory_space<vmem>>, %arg11: memref<8x128xf32, #tpu.memory_space<vmem>>) attributes {dimension_semantics = [#tpu.dimension_semantics<parallel>], iteration_bounds = array<i64: 1>, scalar_prefetch = 0 : i64, scratch_operands = 0 : i64, tpu.core_type = #tpu.core_type<tc>, window_params = [{transform_indices = @transform_0, window_bounds = array<i64: 56, 128>}, {pipeline_mode = #tpu.pipeline_mode<synchronous>, transform_indices = @transform_1, window_bounds = array<i64: 128, 384>}, {pipeline_mode = #tpu.pipeline_mode<synchronous>, transform_indices = @transform_2, window_bounds = array<i64: 128, 384>}, {pipeline_mode = #tpu.pipeline_mode<synchronous>, transform_indices = @transform_3, window_bounds = array<i64: 1, 384>}, {pipeline_mode = #tpu.pipeline_mode<synchronous>, transform_indices = @transform_4, window_bounds = array<i64: 3, 96, 160>}, {pipeline_mode = #tpu.pipeline_mode<synchronous>, transform_indices = @transform_5, window_bounds = array<i64: 1, 160>}, {pipeline_mode = #tpu.pipeline_mode<synchronous>, transform_indices = @transform_6, window_bounds = array<i64: 160, 128>}, {pipeline_mode = #tpu.pipeline_mode<synchronous>, transform_indices = @transform_7, window_bounds = array<i64: 1, 128>}, {pipeline_mode = #tpu.pipeline_mode<synchronous>, transform_indices = @transform_8, window_bounds = array<i64: 128, 128>}, {pipeline_mode = #tpu.pipeline_mode<synchronous>, transform_indices = @transform_9, window_bounds = array<i64: 1, 128>}, {transform_indices = @transform_10, window_bounds = array<i64: 8, 128>}]} {
    %c0 = arith.constant 0 : index
    %c0_0 = arith.constant 0 : index
    %0 = vector.load %arg1[%c0, %c0_0] : memref<56x128xbf16, #tpu.memory_space<vmem>>, vector<48x128xbf16>
    %c8 = arith.constant 8 : index
    %c0_1 = arith.constant 0 : index
    %1 = vector.load %arg1[%c8, %c0_1] : memref<56x128xbf16, #tpu.memory_space<vmem>>, vector<48x128xbf16>
    %c0_2 = arith.constant 0 : index
    %c0_3 = arith.constant 0 : index
    %2 = vector.load %arg2[%c0_2, %c0_3] : memref<128x384xbf16, #tpu.memory_space<vmem>>, vector<128x384xbf16>
    %cst = arith.constant dense<0.000000e+00> : vector<48x384xf32>
    %3 = tpu.matmul %0, %2, %cst {dimension_numbers = #tpu.dot_dimension_numbers<[1], [0], [0], [1], [0, 0, 1, 1], [], []>} : vector<48x128xbf16>, vector<128x384xbf16>, vector<48x384xf32> -> vector<48x384xf32>
    %c0_4 = arith.constant 0 : index
    %c0_5 = arith.constant 0 : index
    %4 = vector.load %arg3[%c0_4, %c0_5] : memref<128x384xbf16, #tpu.memory_space<vmem>>, vector<128x384xbf16>
    %cst_6 = arith.constant dense<0.000000e+00> : vector<48x384xf32>
    %5 = tpu.matmul %1, %4, %cst_6 {dimension_numbers = #tpu.dot_dimension_numbers<[1], [0], [0], [1], [0, 0, 1, 1], [], []>} : vector<48x128xbf16>, vector<128x384xbf16>, vector<48x384xf32> -> vector<48x384xf32>
    %6 = arith.addf %3, %5 : vector<48x384xf32>
    %c0_7 = arith.constant 0 : index
    %c0_8 = arith.constant 0 : index
    %7 = vector.load %arg4[%c0_7, %c0_8] : memref<1x384xf32, #tpu.memory_space<vmem>>, vector<1x384xf32>
    %8 = vector.broadcast %7 : vector<1x384xf32> to vector<48x384xf32>
    %9 = arith.addf %6, %8 : vector<48x384xf32>
    %cst_9 = arith.constant 0.000000e+00 : f32
    %10 = vector.broadcast %cst_9 : f32 to vector<48x384xf32>
    %11 = arith.maximumf %9, %10 : vector<48x384xf32>
    %12 = vector.extract_strided_slice %11 {offsets = [0, 0], sizes = [48, 192], strides = [1, 1]} : vector<48x384xf32> to vector<48x192xf32>
    %13 = vector.extract_strided_slice %11 {offsets = [0, 192], sizes = [48, 192], strides = [1, 1]} : vector<48x384xf32> to vector<48x192xf32>
    %14 = arith.maximumf %12, %13 : vector<48x192xf32>
    %15 = vector.extract_strided_slice %14 {offsets = [0, 0], sizes = [48, 96], strides = [1, 1]} : vector<48x192xf32> to vector<48x96xf32>
    %16 = vector.extract_strided_slice %14 {offsets = [0, 96], sizes = [48, 96], strides = [1, 1]} : vector<48x192xf32> to vector<48x96xf32>
    %17 = arith.maximumf %15, %16 : vector<48x96xf32>
    %18 = arith.truncf %17 : vector<48x96xf32> to vector<48x96xbf16>
    %19 = vector.extract_strided_slice %18 {offsets = [0, 0], sizes = [32, 96], strides = [1, 1]} : vector<48x96xbf16> to vector<32x96xbf16>
    %c0_10 = arith.constant 0 : index
    %c0_11 = arith.constant 0 : index
    %c0_12 = arith.constant 0 : index
    %20 = vector.load %arg5[%c0_10, %c0_11, %c0_12] : memref<3x96x160xbf16, #tpu.memory_space<vmem>>, vector<1x96x160xbf16>
    %21 = vector.shape_cast %20 : vector<1x96x160xbf16> to vector<96x160xbf16>
    %cst_13 = arith.constant dense<0.000000e+00> : vector<32x160xf32>
    %22 = tpu.matmul %19, %21, %cst_13 {dimension_numbers = #tpu.dot_dimension_numbers<[1], [0], [0], [1], [0, 0, 1, 1], [], []>} : vector<32x96xbf16>, vector<96x160xbf16>, vector<32x160xf32> -> vector<32x160xf32>
    %23 = vector.extract_strided_slice %18 {offsets = [8, 0], sizes = [32, 96], strides = [1, 1]} : vector<48x96xbf16> to vector<32x96xbf16>
    %c1 = arith.constant 1 : index
    %c0_14 = arith.constant 0 : index
    %c0_15 = arith.constant 0 : index
    %24 = vector.load %arg5[%c1, %c0_14, %c0_15] : memref<3x96x160xbf16, #tpu.memory_space<vmem>>, vector<1x96x160xbf16>
    %25 = vector.shape_cast %24 : vector<1x96x160xbf16> to vector<96x160xbf16>
    %cst_16 = arith.constant dense<0.000000e+00> : vector<32x160xf32>
    %26 = tpu.matmul %23, %25, %cst_16 {dimension_numbers = #tpu.dot_dimension_numbers<[1], [0], [0], [1], [0, 0, 1, 1], [], []>} : vector<32x96xbf16>, vector<96x160xbf16>, vector<32x160xf32> -> vector<32x160xf32>
    %27 = arith.addf %22, %26 : vector<32x160xf32>
    %28 = vector.extract_strided_slice %18 {offsets = [16, 0], sizes = [32, 96], strides = [1, 1]} : vector<48x96xbf16> to vector<32x96xbf16>
    %c2 = arith.constant 2 : index
    %c0_17 = arith.constant 0 : index
    %c0_18 = arith.constant 0 : index
    %29 = vector.load %arg5[%c2, %c0_17, %c0_18] : memref<3x96x160xbf16, #tpu.memory_space<vmem>>, vector<1x96x160xbf16>
    %30 = vector.shape_cast %29 : vector<1x96x160xbf16> to vector<96x160xbf16>
    %cst_19 = arith.constant dense<0.000000e+00> : vector<32x160xf32>
    %31 = tpu.matmul %28, %30, %cst_19 {dimension_numbers = #tpu.dot_dimension_numbers<[1], [0], [0], [1], [0, 0, 1, 1], [], []>} : vector<32x96xbf16>, vector<96x160xbf16>, vector<32x160xf32> -> vector<32x160xf32>
    %32 = arith.addf %27, %31 : vector<32x160xf32>
    %c0_20 = arith.constant 0 : index
    %c0_21 = arith.constant 0 : index
    %33 = vector.load %arg6[%c0_20, %c0_21] : memref<1x160xf32, #tpu.memory_space<vmem>>, vector<1x160xf32>
    %34 = vector.broadcast %33 : vector<1x160xf32> to vector<32x160xf32>
    %35 = arith.addf %32, %34 : vector<32x160xf32>
    %cst_22 = arith.constant 0.000000e+00 : f32
    %36 = vector.broadcast %cst_22 : f32 to vector<32x160xf32>
    %37 = arith.maximumf %35, %36 : vector<32x160xf32>
    %38 = vector.extract_strided_slice %37 {offsets = [0, 0], sizes = [32, 80], strides = [1, 1]} : vector<32x160xf32> to vector<32x80xf32>
    %39 = vector.extract_strided_slice %37 {offsets = [0, 80], sizes = [32, 80], strides = [1, 1]} : vector<32x160xf32> to vector<32x80xf32>
    %40 = arith.maximumf %38, %39 : vector<32x80xf32>
    %41 = vector.extract_strided_slice %40 {offsets = [0, 0], sizes = [32, 40], strides = [1, 1]} : vector<32x80xf32> to vector<32x40xf32>
    %42 = vector.extract_strided_slice %40 {offsets = [0, 40], sizes = [32, 40], strides = [1, 1]} : vector<32x80xf32> to vector<32x40xf32>
    %43 = arith.maximumf %41, %42 : vector<32x40xf32>
    %44 = arith.truncf %43 : vector<32x40xf32> to vector<32x40xbf16>
    %45 = vector.extract_strided_slice %44 {offsets = [0, 0], sizes = [8, 40], strides = [1, 1]} : vector<32x40xbf16> to vector<8x40xbf16>
    %c0_23 = arith.constant 0 : index
    %c0_24 = arith.constant 0 : index
    %46 = vector.load %arg7[%c0_23, %c0_24] : memref<160x128xbf16, #tpu.memory_space<vmem>>, vector<40x128xbf16>
    %cst_25 = arith.constant dense<0.000000e+00> : vector<8x128xf32>
    %47 = tpu.matmul %45, %46, %cst_25 {dimension_numbers = #tpu.dot_dimension_numbers<[1], [0], [0], [1], [0, 0, 1, 1], [], []>} : vector<8x40xbf16>, vector<40x128xbf16>, vector<8x128xf32> -> vector<8x128xf32>
    %48 = vector.extract_strided_slice %44 {offsets = [8, 0], sizes = [8, 40], strides = [1, 1]} : vector<32x40xbf16> to vector<8x40xbf16>
    %c40 = arith.constant 40 : index
    %c0_26 = arith.constant 0 : index
    %49 = vector.load %arg7[%c40, %c0_26] : memref<160x128xbf16, #tpu.memory_space<vmem>>, vector<40x128xbf16>
    %cst_27 = arith.constant dense<0.000000e+00> : vector<8x128xf32>
    %50 = tpu.matmul %48, %49, %cst_27 {dimension_numbers = #tpu.dot_dimension_numbers<[1], [0], [0], [1], [0, 0, 1, 1], [], []>} : vector<8x40xbf16>, vector<40x128xbf16>, vector<8x128xf32> -> vector<8x128xf32>
    %51 = arith.addf %47, %50 : vector<8x128xf32>
    %52 = vector.extract_strided_slice %44 {offsets = [16, 0], sizes = [8, 40], strides = [1, 1]} : vector<32x40xbf16> to vector<8x40xbf16>
    %c80 = arith.constant 80 : index
    %c0_28 = arith.constant 0 : index
    %53 = vector.load %arg7[%c80, %c0_28] : memref<160x128xbf16, #tpu.memory_space<vmem>>, vector<40x128xbf16>
    %cst_29 = arith.constant dense<0.000000e+00> : vector<8x128xf32>
    %54 = tpu.matmul %52, %53, %cst_29 {dimension_numbers = #tpu.dot_dimension_numbers<[1], [0], [0], [1], [0, 0, 1, 1], [], []>} : vector<8x40xbf16>, vector<40x128xbf16>, vector<8x128xf32> -> vector<8x128xf32>
    %55 = arith.addf %51, %54 : vector<8x128xf32>
    %56 = vector.extract_strided_slice %44 {offsets = [24, 0], sizes = [8, 40], strides = [1, 1]} : vector<32x40xbf16> to vector<8x40xbf16>
    %c120 = arith.constant 120 : index
    %c0_30 = arith.constant 0 : index
    %57 = vector.load %arg7[%c120, %c0_30] : memref<160x128xbf16, #tpu.memory_space<vmem>>, vector<40x128xbf16>
    %cst_31 = arith.constant dense<0.000000e+00> : vector<8x128xf32>
    %58 = tpu.matmul %56, %57, %cst_31 {dimension_numbers = #tpu.dot_dimension_numbers<[1], [0], [0], [1], [0, 0, 1, 1], [], []>} : vector<8x40xbf16>, vector<40x128xbf16>, vector<8x128xf32> -> vector<8x128xf32>
    %59 = arith.addf %55, %58 : vector<8x128xf32>
    %c0_32 = arith.constant 0 : index
    %c0_33 = arith.constant 0 : index
    %60 = vector.load %arg8[%c0_32, %c0_33] : memref<1x128xf32, #tpu.memory_space<vmem>>, vector<1x128xf32>
    %61 = vector.broadcast %60 : vector<1x128xf32> to vector<8x128xf32>
    %62 = arith.addf %59, %61 : vector<8x128xf32>
    %cst_34 = arith.constant 0.000000e+00 : f32
    %63 = vector.broadcast %cst_34 : f32 to vector<8x128xf32>
    %64 = arith.maximumf %62, %63 : vector<8x128xf32>
    %65 = arith.truncf %64 : vector<8x128xf32> to vector<8x128xbf16>
    %c0_35 = arith.constant 0 : index
    %c0_36 = arith.constant 0 : index
    %66 = vector.load %arg9[%c0_35, %c0_36] : memref<128x128xbf16, #tpu.memory_space<vmem>>, vector<128x128xbf16>
    %cst_37 = arith.constant dense<0.000000e+00> : vector<8x128xf32>
    %67 = tpu.matmul %65, %66, %cst_37 {dimension_numbers = #tpu.dot_dimension_numbers<[1], [0], [0], [1], [0, 0, 1, 1], [], []>} : vector<8x128xbf16>, vector<128x128xbf16>, vector<8x128xf32> -> vector<8x128xf32>
    %c0_38 = arith.constant 0 : index
    %c0_39 = arith.constant 0 : index
    %68 = vector.load %arg10[%c0_38, %c0_39] : memref<1x128xf32, #tpu.memory_space<vmem>>, vector<1x128xf32>
    %69 = vector.broadcast %68 : vector<1x128xf32> to vector<8x128xf32>
    %70 = arith.addf %67, %69 : vector<8x128xf32>
    %c0_40 = arith.constant 0 : index
    %c0_41 = arith.constant 0 : index
    %71 = vector.load %arg11[%c0_40, %c0_41] : memref<8x128xf32, #tpu.memory_space<vmem>>, vector<8x128xf32>
    tpu.vector_store %arg11[%c0_40, %c0_41], %70 {strides = array<i32>} : memref<8x128xf32, #tpu.memory_space<vmem>>, vector<8x128xf32>,
    return
  }
  func.func @transform_0(%arg0: i32) -> (i32, i32) {
    %c0_i32 = arith.constant 0 : i32
    %c0_i32_0 = arith.constant 0 : i32
    return %arg0, %c0_i32 : i32, i32
  }
  func.func @transform_1(%arg0: i32) -> (i32, i32) {
    %c0_i32 = arith.constant 0 : i32
    %c0_i32_0 = arith.constant 0 : i32
    %c0_i32_1 = arith.constant 0 : i32
    return %c0_i32, %c0_i32_0 : i32, i32
  }
  func.func @transform_2(%arg0: i32) -> (i32, i32) {
    %c0_i32 = arith.constant 0 : i32
    %c0_i32_0 = arith.constant 0 : i32
    %c0_i32_1 = arith.constant 0 : i32
    return %c0_i32, %c0_i32_0 : i32, i32
  }
  func.func @transform_3(%arg0: i32) -> (i32, i32) {
    %c0_i32 = arith.constant 0 : i32
    %c0_i32_0 = arith.constant 0 : i32
    %c0_i32_1 = arith.constant 0 : i32
    return %c0_i32, %c0_i32_0 : i32, i32
  }
  func.func @transform_4(%arg0: i32) -> (i32, i32, i32) {
    %c0_i32 = arith.constant 0 : i32
    %c0_i32_0 = arith.constant 0 : i32
    %c0_i32_1 = arith.constant 0 : i32
    %c0_i32_2 = arith.constant 0 : i32
    return %c0_i32, %c0_i32_0, %c0_i32_1 : i32, i32, i32
  }
  func.func @transform_5(%arg0: i32) -> (i32, i32) {
    %c0_i32 = arith.constant 0 : i32
    %c0_i32_0 = arith.constant 0 : i32
    %c0_i32_1 = arith.constant 0 : i32
    return %c0_i32, %c0_i32_0 : i32, i32
  }
  func.func @transform_6(%arg0: i32) -> (i32, i32) {
    %c0_i32 = arith.constant 0 : i32
    %c0_i32_0 = arith.constant 0 : i32
    %c0_i32_1 = arith.constant 0 : i32
    return %c0_i32, %c0_i32_0 : i32, i32
  }
  func.func @transform_7(%arg0: i32) -> (i32, i32) {
    %c0_i32 = arith.constant 0 : i32
    %c0_i32_0 = arith.constant 0 : i32
    %c0_i32_1 = arith.constant 0 : i32
    return %c0_i32, %c0_i32_0 : i32, i32
  }
  func.func @transform_8(%arg0: i32) -> (i32, i32) {
    %c0_i32 = arith.constant 0 : i32
    %c0_i32_0 = arith.constant 0 : i32
    %c0_i32_1 = arith.constant 0 : i32
    return %c0_i32, %c0_i32_0 : i32, i32
  }
  func.func @transform_9(%arg0: i32) -> (i32, i32) {
    %c0_i32 = arith.constant 0 : i32
    %c0_i32_0 = arith.constant 0 : i32
    %c0_i32_1 = arith.constant 0 : i32
    return %c0_i32, %c0_i32_0 : i32, i32
  }
  func.func @transform_10(%arg0: i32) -> (i32, i32) {
    %c0_i32 = arith.constant 0 : i32
    %c0_i32_0 = arith.constant 0 : i32
    return %arg0, %c0_i32 : i32, i32
  }
}

</mosaic_0001>

<llo_original>
// kernel: _net_forward_packed.1
$region0: #{_net_forward_packed.1}
  #allocation0 [shape = 'u32[]', space=smem, size = 0x4, offset = 0x4, fixed_abs, tag = 'smem constant byte address 0x4 - core index']
  #allocation1 [shape = 'u32[144,128]{1,0:T(1,128)}', space=vmem, size = 0x12000, scoped, tag = 'internal scratch']
  %s0 = inlined_call_operand.vmem [shape: bf16[56,128], index: 0, kind: input, shape index: {}]
  %s1 = inlined_call_operand.vmem [shape: bf16[128,384], index: 1, kind: input, shape index: {}]
  %s2 = inlined_call_operand.vmem [shape: bf16[128,384], index: 2, kind: input, shape index: {}]
  %s3 = inlined_call_operand.vmem [shape: f32[1,384], index: 3, kind: input, shape index: {}]
  %s4 = inlined_call_operand.vmem [shape: bf16[3,96,160], index: 4, kind: input, shape index: {}]
  %s5 = inlined_call_operand.vmem [shape: f32[1,160], index: 5, kind: input, shape index: {}]
  %s6 = inlined_call_operand.vmem [shape: bf16[160,128], index: 6, kind: input, shape index: {}]
  %s7 = inlined_call_operand.vmem [shape: f32[1,128], index: 7, kind: input, shape index: {}]
  %s8 = inlined_call_operand.vmem [shape: bf16[128,128], index: 8, kind: input, shape index: {}]
  %s9 = inlined_call_operand.vmem [shape: f32[1,128], index: 9, kind: input, shape index: {}]
  %s10 = inlined_call_operand.vmem [shape: f32[8,128], index: 10, kind: output, shape index: {}]
  %s11 = sld [smem:[#allocation0]]
  $region50: #{_net_forward_packed.1} parent=0
    _
  %s13 = ssub.s32 1, %s11
  %s14 = scalar_select 0, %s13, %s11
  // Predicated region
  $region2: #{_net_forward_packed.1} parent=0 // pred_check
    _
  $region3: #{_net_forward_packed.1} parent=0 // pred_check_branch
    %16 = sbr.rel (0) target = $region5
  $region4: #{_net_forward_packed.1} parent=0 // pred_region
    _
  $region5: #{_net_forward_packed.1} parent=0 // pred_fallthru
    _
  // Predicated region
  $region6: #{_net_forward_packed.1} parent=0 // pred_check
    _
  $region7: #{_net_forward_packed.1} parent=0 // pred_check_branch
    %18 = sbr.rel (0) target = $region9
  $region8: #{_net_forward_packed.1} parent=0 // pred_region
    _
  $region9: #{_net_forward_packed.1} parent=0 // pred_fallthru
    _
  // Predicated region
  $region10: #{_net_forward_packed.1} parent=0 // pred_check
    _
  $region11: #{_net_forward_packed.1} parent=0 // pred_check_branch
    %20 = sbr.rel (0) target = $region13
  $region12: #{_net_forward_packed.1} parent=0 // pred_region
    _
  $region13: #{_net_forward_packed.1} parent=0 // pred_fallthru
    _
  // Predicated region
  $region14: #{_net_forward_packed.1} parent=0 // pred_check
    _
  $region15: #{_net_forward_packed.1} parent=0 // pred_check_branch
    %22 = sbr.rel (0) target = $region17
  $region16: #{_net_forward_packed.1} parent=0 // pred_region
    _
  $region17: #{_net_forward_packed.1} parent=0 // pred_fallthru
    _
  // Predicated region
  $region18: #{_net_forward_packed.1} parent=0 // pred_check
    _
  $region19: #{_net_forward_packed.1} parent=0 // pred_check_branch
    %24 = sbr.rel (0) target = $region21
  $region20: #{_net_forward_packed.1} parent=0 // pred_region
    _
  $region21: #{_net_forward_packed.1} parent=0 // pred_fallthru
    _
  // Predicated region
  $region22: #{_net_forward_packed.1} parent=0 // pred_check
    _
  $region23: #{_net_forward_packed.1} parent=0 // pred_check_branch
    %26 = sbr.rel (0) target = $region25
  $region24: #{_net_forward_packed.1} parent=0 // pred_region
    _
  $region25: #{_net_forward_packed.1} parent=0 // pred_fallthru
    _
  // Predicated region
  $region26: #{_net_forward_packed.1} parent=0 // pred_check
    _
  $region27: #{_net_forward_packed.1} parent=0 // pred_check_branch
    %28 = sbr.rel (0) target = $region29
  $region28: #{_net_forward_packed.1} parent=0 // pred_region
    _
  $region29: #{_net_forward_packed.1} parent=0 // pred_fallthru
    _
  // Predicated region
  $region30: #{_net_forward_packed.1} parent=0 // pred_check
    _
  $region31: #{_net_forward_packed.1} parent=0 // pred_check_branch
    %30 = sbr.rel (0) target = $region33
  $region32: #{_net_forward_packed.1} parent=0 // pred_region
    _
  $region33: #{_net_forward_packed.1} parent=0 // pred_fallthru
    _
  // Predicated region
  $region34: #{_net_forward_packed.1} parent=0 // pred_check
    _
  $region35: #{_net_forward_packed.1} parent=0 // pred_check_branch
    %32 = sbr.rel (0) target = $region37
  $region36: #{_net_forward_packed.1} parent=0 // pred_region
    _
  $region37: #{_net_forward_packed.1} parent=0 // pred_fallthru
    _
  // Predicated region
  $region38: #{_net_forward_packed.1} parent=0 // pred_check
    _
  $region39: #{_net_forward_packed.1} parent=0 // pred_check_branch
    %34 = sbr.rel (0) target = $region41
  $region40: #{_net_forward_packed.1} parent=0 // pred_region
    _
  $region41: #{_net_forward_packed.1} parent=0 // pred_fallthru
    _
  %v36 = vld [vmem:[%s0] sm:$0xf]
  %v37 = vld [vmem:[%s0 + $0x4] sm:$0xf]
  %v38 = vld [vmem:[%s0 + $0x8] sm:$0xf]
  %v39 = vld [vmem:[%s0 + $0xc] sm:$0xf]
  %v40 = vld [vmem:[%s0 + $0x10] sm:$0xf]
  %v41 = vld [vmem:[%s0 + $0x14] sm:$0xf]
  %v42 = vld [vmem:[%s0 + $0x4] sm:$0xf]
  %v43 = vld [vmem:[%s0 + $0x8] sm:$0xf]
  %v44 = vld [vmem:[%s0 + $0xc] sm:$0xf]
  %v45 = vld [vmem:[%s0 + $0x10] sm:$0xf]
  %v46 = vld [vmem:[%s0 + $0x14] sm:$0xf]
  %v47 = vld [vmem:[%s0 + $0x18] sm:$0xf]
  %v48 = vld [vmem:[%s1] sm:$0xff]
  %v49 = vld [vmem:[%s1 + $0x8] sm:$0xf]
  %v50 = vld [vmem:[%s1 + $0xc] sm:$0xff]
  %v51 = vld [vmem:[%s1 + $0x14] sm:$0xf]
  %v52 = vld [vmem:[%s1 + $0x18] sm:$0xff]
  %v53 = vld [vmem:[%s1 + $0x20] sm:$0xf]
  %v54 = vld [vmem:[%s1 + $0x24] sm:$0xff]
  %v55 = vld [vmem:[%s1 + $0x2c] sm:$0xf]
  %v56 = vld [vmem:[%s1 + $0x30] sm:$0xff]
  %v57 = vld [vmem:[%s1 + $0x38] sm:$0xf]
  %v58 = vld [vmem:[%s1 + $0x3c] sm:$0xff]
  %v59 = vld [vmem:[%s1 + $0x44] sm:$0xf]
  %v60 = vld [vmem:[%s1 + $0x48] sm:$0xff]
  %v61 = vld [vmem:[%s1 + $0x50] sm:$0xf]
  %v62 = vld [vmem:[%s1 + $0x54] sm:$0xff]
  %v63 = vld [vmem:[%s1 + $0x5c] sm:$0xf]
  %v64 = vld [vmem:[%s1 + $0x60] sm:$0xff]
  %v65 = vld [vmem:[%s1 + $0x68] sm:$0xf]
  %v66 = vld [vmem:[%s1 + $0x6c] sm:$0xff]
  %v67 = vld [vmem:[%s1 + $0x74] sm:$0xf]
  %v68 = vld [vmem:[%s1 + $0x78] sm:$0xff]
  %v69 = vld [vmem:[%s1 + $0x80] sm:$0xf]
  %v70 = vld [vmem:[%s1 + $0x84] sm:$0xff]
  %v71 = vld [vmem:[%s1 + $0x8c] sm:$0xf]
  %v72 = vld [vmem:[%s1 + $0x90] sm:$0xff]
  %v73 = vld [vmem:[%s1 + $0x98] sm:$0xf]
  %v74 = vld [vmem:[%s1 + $0x9c] sm:$0xff]
  %v75 = vld [vmem:[%s1 + $0xa4] sm:$0xf]
  %v76 = vld [vmem:[%s1 + $0xa8] sm:$0xff]
  %v77 = vld [vmem:[%s1 + $0xb0] sm:$0xf]
  %v78 = vld [vmem:[%s1 + $0xb4] sm:$0xff]
  %v79 = vld [vmem:[%s1 + $0xbc] sm:$0xf]
  %v80 = vld [vmem:[%s2] sm:$0xff]
  %v81 = vld [vmem:[%s2 + $0x8] sm:$0xf]
  %v82 = vld [vmem:[%s2 + $0xc] sm:$0xff]
  %v83 = vld [vmem:[%s2 + $0x14] sm:$0xf]
  %v84 = vld [vmem:[%s2 + $0x18] sm:$0xff]
  %v85 = vld [vmem:[%s2 + $0x20] sm:$0xf]
  %v86 = vld [vmem:[%s2 + $0x24] sm:$0xff]
  %v87 = vld [vmem:[%s2 + $0x2c] sm:$0xf]
  %v88 = vld [vmem:[%s2 + $0x30] sm:$0xff]
  %v89 = vld [vmem:[%s2 + $0x38] sm:$0xf]
  %v90 = vld [vmem:[%s2 + $0x3c] sm:$0xff]
  %v91 = vld [vmem:[%s2 + $0x44] sm:$0xf]
  %v92 = vld [vmem:[%s2 + $0x48] sm:$0xff]
  %v93 = vld [vmem:[%s2 + $0x50] sm:$0xf]
  %v94 = vld [vmem:[%s2 + $0x54] sm:$0xff]
  %v95 = vld [vmem:[%s2 + $0x5c] sm:$0xf]
  %v96 = vld [vmem:[%s2 + $0x60] sm:$0xff]
  %v97 = vld [vmem:[%s2 + $0x68] sm:$0xf]
  %v98 = vld [vmem:[%s2 + $0x6c] sm:$0xff]
  %v99 = vld [vmem:[%s2 + $0x74] sm:$0xf]
  %v100 = vld [vmem:[%s2 + $0x78] sm:$0xff]
  %v101 = vld [vmem:[%s2 + $0x80] sm:$0xf]
  %v102 = vld [vmem:[%s2 + $0x84] sm:$0xff]
  %v103 = vld [vmem:[%s2 + $0x8c] sm:$0xf]
  %v104 = vld [vmem:[%s2 + $0x90] sm:$0xff]
  %v105 = vld [vmem:[%s2 + $0x98] sm:$0xf]
  %v106 = vld [vmem:[%s2 + $0x9c] sm:$0xff]
  %v107 = vld [vmem:[%s2 + $0xa4] sm:$0xf]
  %v108 = vld [vmem:[%s2 + $0xa8] sm:$0xff]
  %v109 = vld [vmem:[%s2 + $0xb0] sm:$0xf]
  %v110 = vld [vmem:[%s2 + $0xb4] sm:$0xff]
  %v111 = vld [vmem:[%s2 + $0xbc] sm:$0xf]
  %v118 = vunpack.c.l.b16 %v42
  %v119 = vunpack.c.l.b16 %v43
  %v120 = vunpack.c.l.b16 %v44
  %v121 = vunpack.c.l.b16 %v45
  %v122 = vunpack.c.l.b16 %v46
  %v123 = vunpack.c.l.b16 %v47
  %v124 = vpack.c.b16 %v119, %v118
  %v125 = vpack.c.b16 %v121, %v120
  %v126 = vpack.c.b16 %v123, %v122
  %v162 = vunpack.c.l.b16 %v80
  %v163 = vunpack.c.h.b16 %v80
  %v164 = vunpack.c.l.b16 %v81
  %v165 = vunpack.c.l.b16 %v82
  %v166 = vunpack.c.h.b16 %v82
  %v167 = vunpack.c.l.b16 %v83
  %v168 = vunpack.c.l.b16 %v84
  %v169 = vunpack.c.h.b16 %v84
  %v170 = vunpack.c.l.b16 %v85
  %v171 = vunpack.c.l.b16 %v86
  %v172 = vunpack.c.h.b16 %v86
  %v173 = vunpack.c.l.b16 %v87
  %v174 = vunpack.c.l.b16 %v88
  %v175 = vunpack.c.h.b16 %v88
  %v176 = vunpack.c.l.b16 %v89
  %v177 = vunpack.c.l.b16 %v90
  %v178 = vunpack.c.h.b16 %v90
  %v179 = vunpack.c.l.b16 %v91
  %v180 = vunpack.c.l.b16 %v92
  %v181 = vunpack.c.h.b16 %v92
  %v182 = vunpack.c.l.b16 %v93
  %v183 = vunpack.c.l.b16 %v94
  %v184 = vunpack.c.h.b16 %v94
  %v185 = vunpack.c.l.b16 %v95
  %v186 = vunpack.c.l.b16 %v96
  %v187 = vunpack.c.h.b16 %v96
  %v188 = vunpack.c.l.b16 %v97
  %v189 = vunpack.c.l.b16 %v98
  %v190 = vunpack.c.h.b16 %v98
  %v191 = vunpack.c.l.b16 %v99
  %v192 = vunpack.c.l.b16 %v100
  %v193 = vunpack.c.h.b16 %v100
  %v194 = vunpack.c.l.b16 %v101
  %v195 = vunpack.c.l.b16 %v102
  %v196 = vunpack.c.h.b16 %v102
  %v197 = vunpack.c.l.b16 %v103
  %v198 = vunpack.c.l.b16 %v104
  %v199 = vunpack.c.h.b16 %v104
  %v200 = vunpack.c.l.b16 %v105
  %v201 = vunpack.c.l.b16 %v106
  %v202 = vunpack.c.h.b16 %v106
  %v203 = vunpack.c.l.b16 %v107
  %v204 = vunpack.c.l.b16 %v108
  %v205 = vunpack.c.h.b16 %v108
  %v206 = vunpack.c.l.b16 %v109
  %v207 = vunpack.c.l.b16 %v110
  %v208 = vunpack.c.h.b16 %v110
  %v209 = vunpack.c.l.b16 %v111
  %v210 = vpack.c.b16 %v165, %v162
  %v211 = vpack.c.b16 %v166, %v163
  %v212 = vpack.c.b16 %v167, %v164
  %v213 = vpack.c.b16 %v171, %v168
  %v214 = vpack.c.b16 %v172, %v169
  %v215 = vpack.c.b16 %v173, %v170
  %v216 = vpack.c.b16 %v177, %v174
  %v217 = vpack.c.b16 %v178, %v175
  %v218 = vpack.c.b16 %v179, %v176
  %v219 = vpack.c.b16 %v183, %v180
  %v220 = vpack.c.b16 %v184, %v181
  %v221 = vpack.c.b16 %v185, %v182
  %v222 = vpack.c.b16 %v189, %v186
  %v223 = vpack.c.b16 %v190, %v187
  %v224 = vpack.c.b16 %v191, %v188
  %v225 = vpack.c.b16 %v195, %v192
  %v226 = vpack.c.b16 %v196, %v193
  %v227 = vpack.c.b16 %v197, %v194
  %v228 = vpack.c.b16 %v201, %v198
  %v229 = vpack.c.b16 %v202, %v199
  %v230 = vpack.c.b16 %v203, %v200
  %v231 = vpack.c.b16 %v207, %v204
  %v232 = vpack.c.b16 %v208, %v205
  %v233 = vpack.c.b16 %v209, %v206
  %258 = vmatprep.subr.bf16.mxu0 %v232
  %259 = vmatpush1.bf16.msra.mxu0 %v231
  %260 = vmatprep.subr.bf16.mxu0 %v229
  %261 = vmatpush1.bf16.msra.mxu0 %v228
  %262 = vmatprep.subr.bf16.mxu0 %v226
  %263 = vmatpush1.bf16.msra.mxu0 %v225
  %264 = vmatprep.subr.bf16.mxu0 %v223
  %265 = vmatpush1.bf16.msra.mxu0 %v222
  %266 = vmatprep.subr.bf16.mxu0 %v220
  %267 = vmatpush1.bf16.msra.mxu0 %v219
  %268 = vmatprep.subr.bf16.mxu0 %v217
  %269 = vmatpush1.bf16.msra.mxu0 %v216
  %270 = vmatprep.subr.bf16.mxu0 %v214
  %271 = vmatpush1.bf16.msra.mxu0 %v213
  %272 = vmatprep.subr.bf16.mxu0 %v211
  %273 = vmatpush1.bf16.msra.mxu0 %v210
  %274 = vmatprep.subr.bf16.mxu0 0
  %275 = vmatpush2.bf16.msra.mxu0 0
  %276 = vmatprep.subr.bf16.mxu0 0
  %277 = vmatpush2.bf16.msra.mxu0 0
  %278 = vmatprep.subr.bf16.mxu0 0
  %279 = vmatpush2.bf16.msra.mxu0 0
  %280 = vmatprep.subr.bf16.mxu0 0
  %281 = vmatpush2.bf16.msra.mxu0 0
  %282 = vmatprep.subr.bf16.mxu0 0
  %283 = vmatpush2.bf16.msra.mxu0 0
  %284 = vmatprep.subr.bf16.mxu0 0
  %285 = vmatpush2.bf16.msra.mxu0 0
  %286 = vmatprep.subr.bf16.mxu0 0
  %287 = vmatpush2.bf16.msra.mxu0 0
  %288 = vmatprep.subr.bf16.mxu0 0
  %289 = vmatpush2.bf16.msra.mxu0 0
  %290 = vmatprep.mubr.bf16.mxu0 0
  %291 = vmatmul.mubr.bf16.gmra.mxu0 %v124
  %v292 = vpop.f32.mrf.mxu0
  %v293 = vadd.f32 0.0, %v292
  %v294 = vpop.f32.mrf.mxu0
  %v295 = vadd.f32 0.0, %v294
  %v296 = vpop.f32.mrf.mxu0
  %v297 = vadd.f32 0.0, %v296
  %v298 = vpop.f32.mrf.mxu0
  %v299 = vadd.f32 0.0, %v298
  %300 = vmatprep.mubr.bf16.mxu0 0
  %301 = vmatmul.mubr.bf16.gmra.mxu0 %v125
  %v302 = vpop.f32.mrf.mxu0
  %v303 = vadd.f32 0.0, %v302
  %v304 = vpop.f32.mrf.mxu0
  %v305 = vadd.f32 0.0, %v304
  %v306 = vpop.f32.mrf.mxu0
  %v307 = vadd.f32 0.0, %v306
  %v308 = vpop.f32.mrf.mxu0
  %v309 = vadd.f32 0.0, %v308
  %310 = vmatprep.mubr.bf16.mxu0 0
  %311 = vmatmul.mubr.bf16.gmra.mxu0 %v126
  %v312 = vpop.f32.mrf.mxu0
  %v313 = vadd.f32 0.0, %v312
  %v314 = vpop.f32.mrf.mxu0
  %v315 = vadd.f32 0.0, %v314
  %v316 = vpop.f32.mrf.mxu0
  %v317 = vadd.f32 0.0, %v316
  %v318 = vpop.f32.mrf.mxu0
  %v319 = vadd.f32 0.0, %v318
  %320 = vdwg.mxu0
  %321 = vmatprep.subr.bf16.mxu0 0
  %322 = vmatpush1.bf16.msra.mxu0 %v233
  %323 = vmatprep.subr.bf16.mxu0 0
  %324 = vmatpush1.bf16.msra.mxu0 %v230
  %325 = vmatprep.subr.bf16.mxu0 0
  %326 = vmatpush1.bf16.msra.mxu0 %v227
  %327 = vmatprep.subr.bf16.mxu0 0
  %328 = vmatpush1.bf16.msra.mxu0 %v224
  %329 = vmatprep.subr.bf16.mxu0 0
  %330 = vmatpush1.bf16.msra.mxu0 %v221
  %331 = vmatprep.subr.bf16.mxu0 0
  %332 = vmatpush1.bf16.msra.mxu0 %v218
  %333 = vmatprep.subr.bf16.mxu0 0
  %334 = vmatpush1.bf16.msra.mxu0 %v215
  %335 = vmatprep.subr.bf16.mxu0 0
  %336 = vmatpush1.bf16.msra.mxu0 %v212
  %337 = vmatprep.subr.bf16.mxu0 0
  %338 = vmatpush2.bf16.msra.mxu0 0
  %339 = vmatprep.subr.bf16.mxu0 0
  %340 = vmatpush2.bf16.msra.mxu0 0
  %341 = vmatprep.subr.bf16.mxu0 0
  %342 = vmatpush2.bf16.msra.mxu0 0
  %343 = vmatprep.subr.bf16.mxu0 0
  %344 = vmatpush2.bf16.msra.mxu0 0
  %345 = vmatprep.subr.bf16.mxu0 0
  %346 = vmatpush2.bf16.msra.mxu0 0
  %347 = vmatprep.subr.bf16.mxu0 0
  %348 = vmatpush2.bf16.msra.mxu0 0
  %349 = vmatprep.subr.bf16.mxu0 0
  %350 = vmatpush2.bf16.msra.mxu0 0
  %351 = vmatprep.subr.bf16.mxu0 0
  %352 = vmatpush2.bf16.msra.mxu0 0
  %353 = vmatprep.mubr.bf16.mxu0 0
  %354 = vmatmul.mubr.bf16.gmra.mxu0 %v124
  %v355 = vpop.f32.mrf.mxu0
  %v356 = vadd.f32 0.0, %v355
  %v357 = vpop.f32.mrf.mxu0
  %v358 = vpop.f32.mrf.mxu0
  %v359 = vadd.f32 0.0, %v358
  %v360 = vpop.f32.mrf.mxu0
  %361 = vmatprep.mubr.bf16.mxu0 0
  %362 = vmatmul.mubr.bf16.gmra.mxu0 %v125
  %v363 = vpop.f32.mrf.mxu0
  %v364 = vadd.f32 0.0, %v363
  %v365 = vpop.f32.mrf.mxu0
  %v366 = vpop.f32.mrf.mxu0
  %v367 = vadd.f32 0.0, %v366
  %v368 = vpop.f32.mrf.mxu0
  %369 = vmatprep.mubr.bf16.mxu0 0
  %370 = vmatmul.mubr.bf16.gmra.mxu0 %v126
  %v371 = vpop.f32.mrf.mxu0
  %v372 = vadd.f32 0.0, %v371
  %v373 = vpop.f32.mrf.mxu0
  %v374 = vpop.f32.mrf.mxu0
  %v375 = vadd.f32 0.0, %v374
  %v376 = vpop.f32.mrf.mxu0
  %377 = vdwg.mxu0
  %v384 = vunpack.c.l.b16 %v36
  %v385 = vunpack.c.l.b16 %v37
  %v386 = vunpack.c.l.b16 %v38
  %v387 = vunpack.c.l.b16 %v39
  %v388 = vunpack.c.l.b16 %v40
  %v389 = vunpack.c.l.b16 %v41
  %v390 = vpack.c.b16 %v385, %v384
  %v391 = vpack.c.b16 %v387, %v386
  %v392 = vpack.c.b16 %v389, %v388
  %v428 = vunpack.c.l.b16 %v48
  %v429 = vunpack.c.h.b16 %v48
  %v430 = vunpack.c.l.b16 %v49
  %v431 = vunpack.c.l.b16 %v50
  %v432 = vunpack.c.h.b16 %v50
  %v433 = vunpack.c.l.b16 %v51
  %v434 = vunpack.c.l.b16 %v52
  %v435 = vunpack.c.h.b16 %v52
  %v436 = vunpack.c.l.b16 %v53
  %v437 = vunpack.c.l.b16 %v54
  %v438 = vunpack.c.h.b16 %v54
  %v439 = vunpack.c.l.b16 %v55
  %v440 = vunpack.c.l.b16 %v56
  %v441 = vunpack.c.h.b16 %v56
  %v442 = vunpack.c.l.b16 %v57
  %v443 = vunpack.c.l.b16 %v58
  %v444 = vunpack.c.h.b16 %v58
  %v445 = vunpack.c.l.b16 %v59
  %v446 = vunpack.c.l.b16 %v60
  %v447 = vunpack.c.h.b16 %v60
  %v448 = vunpack.c.l.b16 %v61
  %v449 = vunpack.c.l.b16 %v62
  %v450 = vunpack.c.h.b16 %v62
  %v451 = vunpack.c.l.b16 %v63
  %v452 = vunpack.c.l.b16 %v64
  %v453 = vunpack.c.h.b16 %v64
  %v454 = vunpack.c.l.b16 %v65
  %v455 = vunpack.c.l.b16 %v66
  %v456 = vunpack.c.h.b16 %v66
  %v457 = vunpack.c.l.b16 %v67
  %v458 = vunpack.c.l.b16 %v68
  %v459 = vunpack.c.h.b16 %v68
  %v460 = vunpack.c.l.b16 %v69
  %v461 = vunpack.c.l.b16 %v70
  %v462 = vunpack.c.h.b16 %v70
  %v463 = vunpack.c.l.b16 %v71
  %v464 = vunpack.c.l.b16 %v72
  %v465 = vunpack.c.h.b16 %v72
  %v466 = vunpack.c.l.b16 %v73
  %v467 = vunpack.c.l.b16 %v74
  %v468 = vunpack.c.h.b16 %v74
  %v469 = vunpack.c.l.b16 %v75
  %v470 = vunpack.c.l.b16 %v76
  %v471 = vunpack.c.h.b16 %v76
  %v472 = vunpack.c.l.b16 %v77
  %v473 = vunpack.c.l.b16 %v78
  %v474 = vunpack.c.h.b16 %v78
  %v475 = vunpack.c.l.b16 %v79
  %v476 = vpack.c.b16 %v431, %v428
  %v477 = vpack.c.b16 %v432, %v429
  %v478 = vpack.c.b16 %v433, %v430
  %v479 = vpack.c.b16 %v437, %v434
  %v480 = vpack.c.b16 %v438, %v435
  %v481 = vpack.c.b16 %v439, %v436
  %v482 = vpack.c.b16 %v443, %v440
  %v483 = vpack.c.b16 %v444, %v441
  %v484 = vpack.c.b16 %v445, %v442
  %v485 = vpack.c.b16 %v449, %v446
  %v486 = vpack.c.b16 %v450, %v447
  %v487 = vpack.c.b16 %v451, %v448
  %v488 = vpack.c.b16 %v455, %v452
  %v489 = vpack.c.b16 %v456, %v453
  %v490 = vpack.c.b16 %v457, %v454
  %v491 = vpack.c.b16 %v461, %v458
  %v492 = vpack.c.b16 %v462, %v459
  %v493 = vpack.c.b16 %v463, %v460
  %v494 = vpack.c.b16 %v467, %v464
  %v495 = vpack.c.b16 %v468, %v465
  %v496 = vpack.c.b16 %v469, %v466
  %v497 = vpack.c.b16 %v473, %v470
  %v498 = vpack.c.b16 %v474, %v471
  %v499 = vpack.c.b16 %v475, %v472
  %524 = vmatprep.subr.bf16.mxu0 %v498
  %525 = vmatpush1.bf16.msra.mxu0 %v497
  %526 = vmatprep.subr.bf16.mxu0 %v495
  %527 = vmatpush1.bf16.msra.mxu0 %v494
  %528 = vmatprep.subr.bf16.mxu0 %v492
  %529 = vmatpush1.bf16.msra.mxu0 %v491
  %530 = vmatprep.subr.bf16.mxu0 %v489
  %531 = vmatpush1.bf16.msra.mxu0 %v488
  %532 = vmatprep.subr.bf16.mxu0 %v486
  %533 = vmatpush1.bf16.msra.mxu0 %v485
  %534 = vmatprep.subr.bf16.mxu0 %v483
  %535 = vmatpush1.bf16.msra.mxu0 %v482
  %536 = vmatprep.subr.bf16.mxu0 %v480
  %537 = vmatpush1.bf16.msra.mxu0 %v479
  %538 = vmatprep.subr.bf16.mxu0 %v477
  %539 = vmatpush1.bf16.msra.mxu0 %v476
  %540 = vmatprep.subr.bf16.mxu0 0
  %541 = vmatpush2.bf16.msra.mxu0 0
  %542 = vmatprep.subr.bf16.mxu0 0
  %543 = vmatpush2.bf16.msra.mxu0 0
  %544 = vmatprep.subr.bf16.mxu0 0
  %545 = vmatpush2.bf16.msra.mxu0 0
  %546 = vmatprep.subr.bf16.mxu0 0
  %547 = vmatpush2.bf16.msra.mxu0 0
  %548 = vmatprep.subr.bf16.mxu0 0
  %549 = vmatpush2.bf16.msra.mxu0 0
  %550 = vmatprep.subr.bf16.mxu0 0
  %551 = vmatpush2.bf16.msra.mxu0 0
  %552 = vmatprep.subr.bf16.mxu0 0
  %553 = vmatpush2.bf16.msra.mxu0 0
  %554 = vmatprep.subr.bf16.mxu0 0
  %555 = vmatpush2.bf16.msra.mxu0 0
  %556 = vmatprep.mubr.bf16.mxu0 0
  %557 = vmatmul.mubr.bf16.gmra.mxu0 %v390
  %v558 = vpop.f32.mrf.mxu0
  %v559 = vadd.f32 %v293, %v558
  %v560 = vpop.f32.mrf.mxu0
  %v561 = vadd.f32 %v295, %v560
  %v562 = vpop.f32.mrf.mxu0
  %v563 = vadd.f32 %v297, %v562
  %v564 = vpop.f32.mrf.mxu0
  %v565 = vadd.f32 %v299, %v564
  %566 = vmatprep.mubr.bf16.mxu0 0
  %567 = vmatmul.mubr.bf16.gmra.mxu0 %v391
  %v568 = vpop.f32.mrf.mxu0
  %v569 = vadd.f32 %v303, %v568
  %v570 = vpop.f32.mrf.mxu0
  %v571 = vadd.f32 %v305, %v570
  %v572 = vpop.f32.mrf.mxu0
  %v573 = vadd.f32 %v307, %v572
  %v574 = vpop.f32.mrf.mxu0
  %v575 = vadd.f32 %v309, %v574
  %576 = vmatprep.mubr.bf16.mxu0 0
  %577 = vmatmul.mubr.bf16.gmra.mxu0 %v392
  %v578 = vpop.f32.mrf.mxu0
  %v579 = vadd.f32 %v313, %v578
  %v580 = vpop.f32.mrf.mxu0
  %v581 = vadd.f32 %v315, %v580
  %v582 = vpop.f32.mrf.mxu0
  %v583 = vadd.f32 %v317, %v582
  %v584 = vpop.f32.mrf.mxu0
  %v585 = vadd.f32 %v319, %v584
  %586 = vdwg.mxu0
  %587 = vmatprep.subr.bf16.mxu0 0
  %588 = vmatpush1.bf16.msra.mxu0 %v499
  %589 = vmatprep.subr.bf16.mxu0 0
  %590 = vmatpush1.bf16.msra.mxu0 %v496
  %591 = vmatprep.subr.bf16.mxu0 0
  %592 = vmatpush1.bf16.msra.mxu0 %v493
  %593 = vmatprep.subr.bf16.mxu0 0
  %594 = vmatpush1.bf16.msra.mxu0 %v490
  %595 = vmatprep.subr.bf16.mxu0 0
  %596 = vmatpush1.bf16.msra.mxu0 %v487
  %597 = vmatprep.subr.bf16.mxu0 0
  %598 = vmatpush1.bf16.msra.mxu0 %v484
  %599 = vmatprep.subr.bf16.mxu0 0
  %600 = vmatpush1.bf16.msra.mxu0 %v481
  %601 = vmatprep.subr.bf16.mxu0 0
  %602 = vmatpush1.bf16.msra.mxu0 %v478
  %603 = vmatprep.subr.bf16.mxu0 0
  %604 = vmatpush2.bf16.msra.mxu0 0
  %605 = vmatprep.subr.bf16.mxu0 0
  %606 = vmatpush2.bf16.msra.mxu0 0
  %607 = vmatprep.subr.bf16.mxu0 0
  %608 = vmatpush2.bf16.msra.mxu0 0
  %609 = vmatprep.subr.bf16.mxu0 0
  %610 = vmatpush2.bf16.msra.mxu0 0
  %611 = vmatprep.subr.bf16.mxu0 0
  %612 = vmatpush2.bf16.msra.mxu0 0
  %613 = vmatprep.subr.bf16.mxu0 0
  %614 = vmatpush2.bf16.msra.mxu0 0
  %615 = vmatprep.subr.bf16.mxu0 0
  %616 = vmatpush2.bf16.msra.mxu0 0
  %617 = vmatprep.subr.bf16.mxu0 0
  %618 = vmatpush2.bf16.msra.mxu0 0
  %619 = vmatprep.mubr.bf16.mxu0 0
  %620 = vmatmul.mubr.bf16.gmra.mxu0 %v390
  %v621 = vpop.f32.mrf.mxu0
  %v622 = vadd.f32 %v356, %v621
  %v623 = vpop.f32.mrf.mxu0
  %v624 = vpop.f32.mrf.mxu0
  %v625 = vadd.f32 %v359, %v624
  %v626 = vpop.f32.mrf.mxu0
  %627 = vmatprep.mubr.bf16.mxu0 0
  %628 = vmatmul.mubr.bf16.gmra.mxu0 %v391
  %v629 = vpop.f32.mrf.mxu0
  %v630 = vadd.f32 %v364, %v629
  %v631 = vpop.f32.mrf.mxu0
  %v632 = vpop.f32.mrf.mxu0
  %v633 = vadd.f32 %v367, %v632
  %v634 = vpop.f32.mrf.mxu0
  %635 = vmatprep.mubr.bf16.mxu0 0
  %636 = vmatmul.mubr.bf16.gmra.mxu0 %v392
  %v637 = vpop.f32.mrf.mxu0
  %v638 = vadd.f32 %v372, %v637
  %v639 = vpop.f32.mrf.mxu0
  %v640 = vpop.f32.mrf.mxu0
  %v641 = vadd.f32 %v375, %v640
  %v642 = vpop.f32.mrf.mxu0
  %643 = vdwg.mxu0
  %v644 = vld [vmem:[%s3] sm:$0x7]
  %v646 = vlaneseq
  %v647 = vshrl.u32 %v646, 7
  %v648 = vsub.s32 0, %v647
  %v649 = vrot.slane %v644, %v648
  %v650 = vlaneseq
  %v651 = vshrl.u32 %v650, 7
  %v652 = vsub.s32 1, %v651
  %v653 = vrot.slane %v644, %v652
  %v654 = vlaneseq
  %v655 = vshrl.u32 %v654, 7
  %v656 = vsub.s32 2, %v655
  %v657 = vrot.slane %v644, %v656
  %v661 = vadd.f32 %v559, %v649
  %v662 = vadd.f32 %v561, %v653
  %v663 = vadd.f32 %v622, %v657
  %v664 = vadd.f32 %v563, %v649
  %v665 = vadd.f32 %v565, %v653
  %v666 = vadd.f32 %v625, %v657
  %v667 = vadd.f32 %v569, %v649
  %v668 = vadd.f32 %v571, %v653
  %v669 = vadd.f32 %v630, %v657
  %v670 = vadd.f32 %v573, %v649
  %v671 = vadd.f32 %v575, %v653
  %v672 = vadd.f32 %v633, %v657
  %v673 = vadd.f32 %v579, %v649
  %v674 = vadd.f32 %v581, %v653
  %v675 = vadd.f32 %v638, %v657
  %v676 = vadd.f32 %v583, %v649
  %v677 = vadd.f32 %v585, %v653
  %v678 = vadd.f32 %v641, %v657
  %v679 = vmax.f32 %v661, 0.0
  %v680 = vmax.f32 %v662, 0.0
  %v681 = vmax.f32 %v663, 0.0
  %v682 = vmax.f32 %v664, 0.0
  %v683 = vmax.f32 %v665, 0.0
  %v684 = vmax.f32 %v666, 0.0
  %v685 = vmax.f32 %v667, 0.0
  %v686 = vmax.f32 %v668, 0.0
  %v687 = vmax.f32 %v669, 0.0
  %v688 = vmax.f32 %v670, 0.0
  %v689 = vmax.f32 %v671, 0.0
  %v690 = vmax.f32 %v672, 0.0
  %v691 = vmax.f32 %v673, 0.0
  %v692 = vmax.f32 %v674, 0.0
  %v693 = vmax.f32 %v675, 0.0
  %v694 = vmax.f32 %v676, 0.0
  %v695 = vmax.f32 %v677, 0.0
  %v696 = vmax.f32 %v678, 0.0
  %709 = vrot.lane.b32.xlu0 %v680, 64
  %v710 = vpop.permute.xlu0 %709
  %711 = vrot.lane.b32.xlu0 %v681, 64
  %v712 = vpop.permute.xlu0 %711
  %713 = vrot.lane.b32.xlu0 %v683, 64
  %v714 = vpop.permute.xlu0 %713
  %715 = vrot.lane.b32.xlu0 %v684, 64
  %v716 = vpop.permute.xlu0 %715
  %717 = vrot.lane.b32.xlu0 %v686, 64
  %v718 = vpop.permute.xlu0 %717
  %719 = vrot.lane.b32.xlu0 %v687, 64
  %v720 = vpop.permute.xlu0 %719
  %721 = vrot.lane.b32.xlu0 %v689, 64
  %v722 = vpop.permute.xlu0 %721
  %723 = vrot.lane.b32.xlu0 %v690, 64
  %v724 = vpop.permute.xlu0 %723
  %725 = vrot.lane.b32.xlu0 %v692, 64
  %v726 = vpop.permute.xlu0 %725
  %727 = vrot.lane.b32.xlu0 %v693, 64
  %v728 = vpop.permute.xlu0 %727
  %729 = vrot.lane.b32.xlu0 %v695, 64
  %v730 = vpop.permute.xlu0 %729
  %731 = vrot.lane.b32.xlu0 %v696, 64
  %v732 = vpop.permute.xlu0 %731
  %vm733 = vcmask 523264
  %v734 = vsel %vm733, %v710, %v712
  %v735 = vsel %vm733, %v714, %v716
  %v736 = vsel %vm733, %v718, %v720
  %v737 = vsel %vm733, %v722, %v724
  %v738 = vsel %vm733, %v726, %v728
  %v739 = vsel %vm733, %v730, %v732
  %v752 = vmax.f32 %v679, %v734
  %v753 = vmax.f32 %v680, %v712
  %v754 = vmax.f32 %v682, %v735
  %v755 = vmax.f32 %v683, %v716
  %v756 = vmax.f32 %v685, %v736
  %v757 = vmax.f32 %v686, %v720
  %v758 = vmax.f32 %v688, %v737
  %v759 = vmax.f32 %v689, %v724
  %v760 = vmax.f32 %v691, %v738
  %v761 = vmax.f32 %v692, %v728
  %v762 = vmax.f32 %v694, %v739
  %v763 = vmax.f32 %v695, %v732
  %776 = vrot.lane.b32.xlu0 %v752, 32
  %v777 = vpop.permute.xlu0 %776
  %778 = vrot.lane.b32.xlu0 %v753, 32
  %v779 = vpop.permute.xlu0 %778
  %780 = vrot.lane.b32.xlu0 %v754, 32
  %v781 = vpop.permute.xlu0 %780
  %782 = vrot.lane.b32.xlu0 %v755, 32
  %v783 = vpop.permute.xlu0 %782
  %784 = vrot.lane.b32.xlu0 %v756, 32
  %v785 = vpop.permute.xlu0 %784
  %786 = vrot.lane.b32.xlu0 %v757, 32
  %v787 = vpop.permute.xlu0 %786
  %788 = vrot.lane.b32.xlu0 %v758, 32
  %v789 = vpop.permute.xlu0 %788
  %790 = vrot.lane.b32.xlu0 %v759, 32
  %v791 = vpop.permute.xlu0 %790
  %792 = vrot.lane.b32.xlu0 %v760, 32
  %v793 = vpop.permute.xlu0 %792
  %794 = vrot.lane.b32.xlu0 %v761, 32
  %v795 = vpop.permute.xlu0 %794
  %796 = vrot.lane.b32.xlu0 %v762, 32
  %v797 = vpop.permute.xlu0 %796
  %798 = vrot.lane.b32.xlu0 %v763, 32
  %v799 = vpop.permute.xlu0 %798
  %vm800 = vcmask 261120
  %v801 = vsel %vm800, %v777, %v779
  %v802 = vsel %vm800, %v781, %v783
  %v803 = vsel %vm800, %v785, %v787
  %v804 = vsel %vm800, %v789, %v791
  %v805 = vsel %vm800, %v793, %v795
  %v806 = vsel %vm800, %v797, %v799
  %v813 = vmax.f32 %v752, %v801
  %v814 = vmax.f32 %v754, %v802
  %v815 = vmax.f32 %v756, %v803
  %v816 = vmax.f32 %v758, %v804
  %v817 = vmax.f32 %v760, %v805
  %v818 = vmax.f32 %v762, %v806
  %v819 = vpack.c.bf16 %v814, %v813
  %v820 = vpack.c.bf16 %v816, %v815
  %v821 = vpack.c.bf16 %v818, %v817
  %v822 = vld [vmem:[%s4] sm:$0xff]
  %v823 = vld [vmem:[%s4 + $0x8] sm:$0xff]
  %v824 = vld [vmem:[%s4 + $0x10] sm:$0xff]
  %v825 = vld [vmem:[%s4 + $0x18] sm:$0xff]
  %v826 = vld [vmem:[%s4 + $0x20] sm:$0xff]
  %v827 = vld [vmem:[%s4 + $0x28] sm:$0xff]
  %v828 = vld [vmem:[%s4 + $0x30] sm:$0xff]
  %v829 = vld [vmem:[%s4 + $0x38] sm:$0xff]
  %v830 = vld [vmem:[%s4 + $0x40] sm:$0xff]
  %v831 = vld [vmem:[%s4 + $0x48] sm:$0xff]
  %v832 = vld [vmem:[%s4 + $0x50] sm:$0xff]
  %v833 = vld [vmem:[%s4 + $0x58] sm:$0xff]
  %s834 = scalar_lea.vmem %s4, 96
  %v835 = vld [vmem:[%s834] sm:$0xff]
  %v836 = vld [vmem:[%s834 + $0x8] sm:$0xff]
  %v837 = vld [vmem:[%s834 + $0x10] sm:$0xff]
  %v838 = vld [vmem:[%s834 + $0x18] sm:$0xff]
  %v839 = vld [vmem:[%s834 + $0x20] sm:$0xff]
  %v840 = vld [vmem:[%s834 + $0x28] sm:$0xff]
  %v841 = vld [vmem:[%s834 + $0x30] sm:$0xff]
  %v842 = vld [vmem:[%s834 + $0x38] sm:$0xff]
  %v843 = vld [vmem:[%s834 + $0x40] sm:$0xff]
  %v844 = vld [vmem:[%s834 + $0x48] sm:$0xff]
  %v845 = vld [vmem:[%s834 + $0x50] sm:$0xff]
  %v846 = vld [vmem:[%s834 + $0x58] sm:$0xff]
  %vm850 = vcmask 1043456
  %v851 = vrot.slane %v819, 4
  %v852 = vrot.slane %v820, 4
  %v853 = vsel %vm850, %v851, %v852
  %v854 = vrot.slane %v821, 4
  %v855 = vsel %vm850, %v852, %v854
  %v868 = vunpack.c.l.b16 %v835
  %v869 = vunpack.c.h.b16 %v835
  %v870 = vunpack.c.l.b16 %v836
  %v871 = vunpack.c.h.b16 %v836
  %v872 = vunpack.c.l.b16 %v837
  %v873 = vunpack.c.h.b16 %v837
  %v874 = vunpack.c.l.b16 %v838
  %v875 = vunpack.c.h.b16 %v838
  %v876 = vunpack.c.l.b16 %v839
  %v877 = vunpack.c.h.b16 %v839
  %v878 = vunpack.c.l.b16 %v840
  %v879 = vunpack.c.h.b16 %v840
  %v880 = vunpack.c.l.b16 %v841
  %v881 = vunpack.c.h.b16 %v841
  %v882 = vunpack.c.l.b16 %v842
  %v883 = vunpack.c.h.b16 %v842
  %v884 = vunpack.c.l.b16 %v843
  %v885 = vunpack.c.h.b16 %v843
  %v886 = vunpack.c.l.b16 %v844
  %v887 = vunpack.c.h.b16 %v844
  %v888 = vunpack.c.l.b16 %v845
  %v889 = vunpack.c.h.b16 %v845
  %v890 = vunpack.c.l.b16 %v846
  %v891 = vunpack.c.h.b16 %v846
  %v892 = vpack.c.b16 %v870, %v868
  %v893 = vpack.c.b16 %v871, %v869
  %v894 = vpack.c.b16 %v874, %v872
  %v895 = vpack.c.b16 %v875, %v873
  %v896 = vpack.c.b16 %v878, %v876
  %v897 = vpack.c.b16 %v879, %v877
  %v898 = vpack.c.b16 %v882, %v880
  %v899 = vpack.c.b16 %v883, %v881
  %v900 = vpack.c.b16 %v886, %v884
  %v901 = vpack.c.b16 %v887, %v885
  %v902 = vpack.c.b16 %v890, %v888
  %v903 = vpack.c.b16 %v891, %v889
  %vm916 = vcmask 785408
  %v918 = vsel %vm916, %v853, 0
  %v921 = vsel %vm916, %v855, 0
  %923 = vmatprep.subr.bf16.mxu0 0
  %924 = vmatpush1.bf16.msra.mxu0 0
  %925 = vmatprep.subr.bf16.mxu0 0
  %926 = vmatpush1.bf16.msra.mxu0 0
  %927 = vmatprep.subr.bf16.mxu0 %v903
  %928 = vmatpush1.bf16.msra.mxu0 %v902
  %929 = vmatprep.subr.bf16.mxu0 %v901
  %930 = vmatpush1.bf16.msra.mxu0 %v900
  %931 = vmatprep.subr.bf16.mxu0 %v899
  %932 = vmatpush1.bf16.msra.mxu0 %v898
  %933 = vmatprep.subr.bf16.mxu0 %v897
  %934 = vmatpush1.bf16.msra.mxu0 %v896
  %935 = vmatprep.subr.bf16.mxu0 %v895
  %936 = vmatpush1.bf16.msra.mxu0 %v894
  %937 = vmatprep.subr.bf16.mxu0 %v893
  %938 = vmatpush1.bf16.msra.mxu0 %v892
  %939 = vmatprep.subr.bf16.mxu0 0
  %940 = vmatpush2.bf16.msra.mxu0 0
  %941 = vmatprep.subr.bf16.mxu0 0
  %942 = vmatpush2.bf16.msra.mxu0 0
  %943 = vmatprep.subr.bf16.mxu0 0
  %944 = vmatpush2.bf16.msra.mxu0 0
  %945 = vmatprep.subr.bf16.mxu0 0
  %946 = vmatpush2.bf16.msra.mxu0 0
  %947 = vmatprep.subr.bf16.mxu0 0
  %948 = vmatpush2.bf16.msra.mxu0 0
  %949 = vmatprep.subr.bf16.mxu0 0
  %950 = vmatpush2.bf16.msra.mxu0 0
  %951 = vmatprep.subr.bf16.mxu0 0
  %952 = vmatpush2.bf16.msra.mxu0 0
  %953 = vmatprep.subr.bf16.mxu0 0
  %954 = vmatpush2.bf16.msra.mxu0 0
  %955 = vmatprep.mubr.bf16.mxu0 0
  %956 = vmatmul.mubr.bf16.gmra.mxu0 %v918
  %v957 = vpop.f32.mrf.mxu0
  %v958 = vadd.f32 0.0, %v957
  %v959 = vpop.f32.mrf.mxu0
  %v960 = vadd.f32 0.0, %v959
  %v961 = vpop.f32.mrf.mxu0
  %v962 = vadd.f32 0.0, %v961
  %v963 = vpop.f32.mrf.mxu0
  %v964 = vadd.f32 0.0, %v963
  %965 = vmatprep.mubr.bf16.mxu0 0
  %966 = vmatmul.mubr.bf16.gmra.mxu0 %v921
  %v967 = vpop.f32.mrf.mxu0
  %v968 = vadd.f32 0.0, %v967
  %v969 = vpop.f32.mrf.mxu0
  %v970 = vadd.f32 0.0, %v969
  %v971 = vpop.f32.mrf.mxu0
  %v972 = vadd.f32 0.0, %v971
  %v973 = vpop.f32.mrf.mxu0
  %v974 = vadd.f32 0.0, %v973
  %975 = vdwg.mxu0
  %v988 = vunpack.c.l.b16 %v822
  %v989 = vunpack.c.h.b16 %v822
  %v990 = vunpack.c.l.b16 %v823
  %v991 = vunpack.c.h.b16 %v823
  %v992 = vunpack.c.l.b16 %v824
  %v993 = vunpack.c.h.b16 %v824
  %v994 = vunpack.c.l.b16 %v825
  %v995 = vunpack.c.h.b16 %v825
  %v996 = vunpack.c.l.b16 %v826
  %v997 = vunpack.c.h.b16 %v826
  %v998 = vunpack.c.l.b16 %v827
  %v999 = vunpack.c.h.b16 %v827
  %v1000 = vunpack.c.l.b16 %v828
  %v1001 = vunpack.c.h.b16 %v828
  %v1002 = vunpack.c.l.b16 %v829
  %v1003 = vunpack.c.h.b16 %v829
  %v1004 = vunpack.c.l.b16 %v830
  %v1005 = vunpack.c.h.b16 %v830
  %v1006 = vunpack.c.l.b16 %v831
  %v1007 = vunpack.c.h.b16 %v831
  %v1008 = vunpack.c.l.b16 %v832
  %v1009 = vunpack.c.h.b16 %v832
  %v1010 = vunpack.c.l.b16 %v833
  %v1011 = vunpack.c.h.b16 %v833
  %v1012 = vpack.c.b16 %v990, %v988
  %v1013 = vpack.c.b16 %v991, %v989
  %v1014 = vpack.c.b16 %v994, %v992
  %v1015 = vpack.c.b16 %v995, %v993
  %v1016 = vpack.c.b16 %v998, %v996
  %v1017 = vpack.c.b16 %v999, %v997
  %v1018 = vpack.c.b16 %v1002, %v1000
  %v1019 = vpack.c.b16 %v1003, %v1001
  %v1020 = vpack.c.b16 %v1006, %v1004
  %v1021 = vpack.c.b16 %v1007, %v1005
  %v1022 = vpack.c.b16 %v1010, %v1008
  %v1023 = vpack.c.b16 %v1011, %v1009
  %v1037 = vsel %vm916, %v819, 0
  %v1040 = vsel %vm916, %v820, 0
  %1042 = vmatprep.subr.bf16.mxu0 0
  %1043 = vmatpush1.bf16.msra.mxu0 0
  %1044 = vmatprep.subr.bf16.mxu0 0
  %1045 = vmatpush1.bf16.msra.mxu0 0
  %1046 = vmatprep.subr.bf16.mxu0 %v1023
  %1047 = vmatpush1.bf16.msra.mxu0 %v1022
  %1048 = vmatprep.subr.bf16.mxu0 %v1021
  %1049 = vmatpush1.bf16.msra.mxu0 %v1020
  %1050 = vmatprep.subr.bf16.mxu0 %v1019
  %1051 = vmatpush1.bf16.msra.mxu0 %v1018
  %1052 = vmatprep.subr.bf16.mxu0 %v1017
  %1053 = vmatpush1.bf16.msra.mxu0 %v1016
  %1054 = vmatprep.subr.bf16.mxu0 %v1015
  %1055 = vmatpush1.bf16.msra.mxu0 %v1014
  %1056 = vmatprep.subr.bf16.mxu0 %v1013
  %1057 = vmatpush1.bf16.msra.mxu0 %v1012
  %1058 = vmatprep.subr.bf16.mxu0 0
  %1059 = vmatpush2.bf16.msra.mxu0 0
  %1060 = vmatprep.subr.bf16.mxu0 0
  %1061 = vmatpush2.bf16.msra.mxu0 0
  %1062 = vmatprep.subr.bf16.mxu0 0
  %1063 = vmatpush2.bf16.msra.mxu0 0
  %1064 = vmatprep.subr.bf16.mxu0 0
  %1065 = vmatpush2.bf16.msra.mxu0 0
  %1066 = vmatprep.subr.bf16.mxu0 0
  %1067 = vmatpush2.bf16.msra.mxu0 0
  %1068 = vmatprep.subr.bf16.mxu0 0
  %1069 = vmatpush2.bf16.msra.mxu0 0
  %1070 = vmatprep.subr.bf16.mxu0 0
  %1071 = vmatpush2.bf16.msra.mxu0 0
  %1072 = vmatprep.subr.bf16.mxu0 0
  %1073 = vmatpush2.bf16.msra.mxu0 0
  %1074 = vmatprep.mubr.bf16.mxu0 0
  %1075 = vmatmul.mubr.bf16.gmra.mxu0 %v1037
  %v1076 = vpop.f32.mrf.mxu0
  %v1077 = vadd.f32 %v958, %v1076
  %v1078 = vpop.f32.mrf.mxu0
  %v1079 = vadd.f32 %v960, %v1078
  %v1080 = vpop.f32.mrf.mxu0
  %v1081 = vadd.f32 %v962, %v1080
  %v1082 = vpop.f32.mrf.mxu0
  %v1083 = vadd.f32 %v964, %v1082
  %1084 = vmatprep.mubr.bf16.mxu0 0
  %1085 = vmatmul.mubr.bf16.gmra.mxu0 %v1040
  %v1086 = vpop.f32.mrf.mxu0
  %v1087 = vadd.f32 %v968, %v1086
  %v1088 = vpop.f32.mrf.mxu0
  %v1089 = vadd.f32 %v970, %v1088
  %v1090 = vpop.f32.mrf.mxu0
  %v1091 = vadd.f32 %v972, %v1090
  %v1092 = vpop.f32.mrf.mxu0
  %v1093 = vadd.f32 %v974, %v1092
  %1094 = vdwg.mxu0
  %s1095 = scalar_lea.vmem %s4, 192
  %v1096 = vld [vmem:[%s1095] sm:$0xff]
  %v1097 = vld [vmem:[%s1095 + $0x8] sm:$0xff]
  %v1098 = vld [vmem:[%s1095 + $0x10] sm:$0xff]
  %v1099 = vld [vmem:[%s1095 + $0x18] sm:$0xff]
  %v1100 = vld [vmem:[%s1095 + $0x20] sm:$0xff]
  %v1101 = vld [vmem:[%s1095 + $0x28] sm:$0xff]
  %v1102 = vld [vmem:[%s1095 + $0x30] sm:$0xff]
  %v1103 = vld [vmem:[%s1095 + $0x38] sm:$0xff]
  %v1104 = vld [vmem:[%s1095 + $0x40] sm:$0xff]
  %v1105 = vld [vmem:[%s1095 + $0x48] sm:$0xff]
  %v1106 = vld [vmem:[%s1095 + $0x50] sm:$0xff]
  %v1107 = vld [vmem:[%s1095 + $0x58] sm:$0xff]
  %v1120 = vunpack.c.l.b16 %v1096
  %v1121 = vunpack.c.h.b16 %v1096
  %v1122 = vunpack.c.l.b16 %v1097
  %v1123 = vunpack.c.h.b16 %v1097
  %v1124 = vunpack.c.l.b16 %v1098
  %v1125 = vunpack.c.h.b16 %v1098
  %v1126 = vunpack.c.l.b16 %v1099
  %v1127 = vunpack.c.h.b16 %v1099
  %v1128 = vunpack.c.l.b16 %v1100
  %v1129 = vunpack.c.h.b16 %v1100
  %v1130 = vunpack.c.l.b16 %v1101
  %v1131 = vunpack.c.h.b16 %v1101
  %v1132 = vunpack.c.l.b16 %v1102
  %v1133 = vunpack.c.h.b16 %v1102
  %v1134 = vunpack.c.l.b16 %v1103
  %v1135 = vunpack.c.h.b16 %v1103
  %v1136 = vunpack.c.l.b16 %v1104
  %v1137 = vunpack.c.h.b16 %v1104
  %v1138 = vunpack.c.l.b16 %v1105
  %v1139 = vunpack.c.h.b16 %v1105
  %v1140 = vunpack.c.l.b16 %v1106
  %v1141 = vunpack.c.h.b16 %v1106
  %v1142 = vunpack.c.l.b16 %v1107
  %v1143 = vunpack.c.h.b16 %v1107
  %v1144 = vpack.c.b16 %v1122, %v1120
  %v1145 = vpack.c.b16 %v1123, %v1121
  %v1146 = vpack.c.b16 %v1126, %v1124
  %v1147 = vpack.c.b16 %v1127, %v1125
  %v1148 = vpack.c.b16 %v1130, %v1128
  %v1149 = vpack.c.b16 %v1131, %v1129
  %v1150 = vpack.c.b16 %v1134, %v1132
  %v1151 = vpack.c.b16 %v1135, %v1133
  %v1152 = vpack.c.b16 %v1138, %v1136
  %v1153 = vpack.c.b16 %v1139, %v1137
  %v1154 = vpack.c.b16 %v1142, %v1140
  %v1155 = vpack.c.b16 %v1143, %v1141
  %v1169 = vsel %vm916, %v821, 0
  %1171 = vmatprep.subr.bf16.mxu0 0
  %1172 = vmatpush1.bf16.msra.mxu0 0
  %1173 = vmatprep.subr.bf16.mxu0 0
  %1174 = vmatpush1.bf16.msra.mxu0 0
  %1175 = vmatprep.subr.bf16.mxu0 %v1155
  %1176 = vmatpush1.bf16.msra.mxu0 %v1154
  %1177 = vmatprep.subr.bf16.mxu0 %v1153
  %1178 = vmatpush1.bf16.msra.mxu0 %v1152
  %1179 = vmatprep.subr.bf16.mxu0 %v1151
  %1180 = vmatpush1.bf16.msra.mxu0 %v1150
  %1181 = vmatprep.subr.bf16.mxu0 %v1149
  %1182 = vmatpush1.bf16.msra.mxu0 %v1148
  %1183 = vmatprep.subr.bf16.mxu0 %v1147
  %1184 = vmatpush1.bf16.msra.mxu0 %v1146
  %1185 = vmatprep.subr.bf16.mxu0 %v1145
  %1186 = vmatpush1.bf16.msra.mxu0 %v1144
  %1187 = vmatprep.subr.bf16.mxu0 0
  %1188 = vmatpush2.bf16.msra.mxu0 0
  %1189 = vmatprep.subr.bf16.mxu0 0
  %1190 = vmatpush2.bf16.msra.mxu0 0
  %1191 = vmatprep.subr.bf16.mxu0 0
  %1192 = vmatpush2.bf16.msra.mxu0 0
  %1193 = vmatprep.subr.bf16.mxu0 0
  %1194 = vmatpush2.bf16.msra.mxu0 0
  %1195 = vmatprep.subr.bf16.mxu0 0
  %1196 = vmatpush2.bf16.msra.mxu0 0
  %1197 = vmatprep.subr.bf16.mxu0 0
  %1198 = vmatpush2.bf16.msra.mxu0 0
  %1199 = vmatprep.subr.bf16.mxu0 0
  %1200 = vmatpush2.bf16.msra.mxu0 0
  %1201 = vmatprep.subr.bf16.mxu0 0
  %1202 = vmatpush2.bf16.msra.mxu0 0
  %1203 = vmatprep.mubr.bf16.mxu0 0
  %1204 = vmatmul.mubr.bf16.gmra.mxu0 %v1040
  %v1205 = vpop.f32.mrf.mxu0
  %v1206 = vadd.f32 0.0, %v1205
  %v1207 = vpop.f32.mrf.mxu0
  %v1208 = vadd.f32 0.0, %v1207
  %v1209 = vpop.f32.mrf.mxu0
  %v1210 = vadd.f32 0.0, %v1209
  %v1211 = vpop.f32.mrf.mxu0
  %v1212 = vadd.f32 0.0, %v1211
  %1213 = vmatprep.mubr.bf16.mxu0 0
  %1214 = vmatmul.mubr.bf16.gmra.mxu0 %v1169
  %v1215 = vpop.f32.mrf.mxu0
  %v1216 = vadd.f32 0.0, %v1215
  %v1217 = vpop.f32.mrf.mxu0
  %v1218 = vadd.f32 0.0, %v1217
  %v1219 = vpop.f32.mrf.mxu0
  %v1220 = vadd.f32 0.0, %v1219
  %v1221 = vpop.f32.mrf.mxu0
  %v1222 = vadd.f32 0.0, %v1221
  %1223 = vdwg.mxu0
  %v1224 = vadd.f32 %v1077, %v1206
  %v1225 = vadd.f32 %v1079, %v1208
  %v1226 = vadd.f32 %v1081, %v1210
  %v1227 = vadd.f32 %v1083, %v1212
  %v1228 = vadd.f32 %v1087, %v1216
  %v1229 = vadd.f32 %v1089, %v1218
  %v1230 = vadd.f32 %v1091, %v1220
  %v1231 = vadd.f32 %v1093, %v1222
  %v1232 = vld [vmem:[%s5] sm:$0x3]
  %v1234 = vlaneseq
  %v1235 = vshrl.u32 %v1234, 7
  %v1236 = vsub.s32 0, %v1235
  %v1237 = vrot.slane %v1232, %v1236
  %v1238 = vlaneseq
  %v1239 = vshrl.u32 %v1238, 7
  %v1240 = vsub.s32 1, %v1239
  %v1241 = vrot.slane %v1232, %v1240
  %v1244 = vadd.f32 %v1224, %v1237
  %v1245 = vadd.f32 %v1225, %v1241
  %v1246 = vadd.f32 %v1226, %v1237
  %v1247 = vadd.f32 %v1227, %v1241
  %v1248 = vadd.f32 %v1228, %v1237
  %v1249 = vadd.f32 %v1229, %v1241
  %v1250 = vadd.f32 %v1230, %v1237
  %v1251 = vadd.f32 %v1231, %v1241
  %v1252 = vmax.f32 %v1244, 0.0
  %v1253 = vmax.f32 %v1245, 0.0
  %v1254 = vmax.f32 %v1246, 0.0
  %v1255 = vmax.f32 %v1247, 0.0
  %v1256 = vmax.f32 %v1248, 0.0
  %v1257 = vmax.f32 %v1249, 0.0
  %v1258 = vmax.f32 %v1250, 0.0
  %v1259 = vmax.f32 %v1251, 0.0
  %1268 = vrot.lane.b32.xlu0 %v1252, 48
  %v1269 = vpop.permute.xlu0 %1268
  %1270 = vrot.lane.b32.xlu0 %v1253, 48
  %v1271 = vpop.permute.xlu0 %1270
  %1272 = vrot.lane.b32.xlu0 %v1254, 48
  %v1273 = vpop.permute.xlu0 %1272
  %1274 = vrot.lane.b32.xlu0 %v1255, 48
  %v1275 = vpop.permute.xlu0 %1274
  %1276 = vrot.lane.b32.xlu0 %v1256, 48
  %v1277 = vpop.permute.xlu0 %1276
  %1278 = vrot.lane.b32.xlu0 %v1257, 48
  %v1279 = vpop.permute.xlu0 %1278
  %1280 = vrot.lane.b32.xlu0 %v1258, 48
  %v1281 = vpop.permute.xlu0 %1280
  %1282 = vrot.lane.b32.xlu0 %v1259, 48
  %v1283 = vpop.permute.xlu0 %1282
  %vm1284 = vcmask 392192
  %v1285 = vsel %vm1284, %v1269, %v1271
  %v1286 = vsel %vm1284, %v1273, %v1275
  %v1287 = vsel %vm1284, %v1277, %v1279
  %v1288 = vsel %vm1284, %v1281, %v1283
  %v1293 = vmax.f32 %v1252, %v1285
  %v1294 = vmax.f32 %v1254, %v1286
  %v1295 = vmax.f32 %v1256, %v1287
  %v1296 = vmax.f32 %v1258, %v1288
  %1301 = vrot.lane.b32.xlu0 %v1293, 88
  %v1302 = vpop.permute.xlu0 %1301
  %1303 = vrot.lane.b32.xlu0 %v1294, 88
  %v1304 = vpop.permute.xlu0 %1303
  %1305 = vrot.lane.b32.xlu0 %v1295, 88
  %v1306 = vpop.permute.xlu0 %1305
  %1307 = vrot.lane.b32.xlu0 %v1296, 88
  %v1308 = vpop.permute.xlu0 %1307
  %v1313 = vmax.f32 %v1293, %v1302
  %v1314 = vmax.f32 %v1294, %v1304
  %v1315 = vmax.f32 %v1295, %v1306
  %v1316 = vmax.f32 %v1296, %v1308
  %v1317 = vpack.c.bf16 %v1314, %v1313
  %v1318 = vpack.c.bf16 %v1316, %v1315
  %v1319 = vld [vmem:[%s6] sm:$0xf]
  %v1320 = vld [vmem:[%s6 + $0x4] sm:$0xf]
  %v1321 = vld [vmem:[%s6 + $0x8] sm:$0xf]
  %v1322 = vld [vmem:[%s6 + $0xc] sm:$0xf]
  %v1323 = vld [vmem:[%s6 + $0x10] sm:$0xf]
  %v1324 = vld [vmem:[%s6 + $0x14] sm:$0xf]
  %v1325 = vld [vmem:[%s6 + $0x18] sm:$0xf]
  %v1326 = vld [vmem:[%s6 + $0x1c] sm:$0xf]
  %v1327 = vld [vmem:[%s6 + $0x20] sm:$0xf]
  %v1328 = vld [vmem:[%s6 + $0x24] sm:$0xf]
  %v1330 = vrot.slane %v1317, 4
  %v1336 = vunpack.c.l.b16 %v1324
  %v1337 = vunpack.c.l.b16 %v1325
  %v1338 = vunpack.c.l.b16 %v1326
  %v1339 = vunpack.c.l.b16 %v1327
  %v1340 = vunpack.c.l.b16 %v1328
  %v1341 = vpack.c.b16 %v1337, %v1336
  %v1342 = vpack.c.b16 %v1339, %v1338
  %v1343 = vpack.c.b16 %v1340, %v1340
  %vm1346 = vcmask 326656
  %v1348 = vsel %vm1346, %v1330, 0
  %vm1350 = vcmask 1043456
  %v1352 = vsel %vm1350, %v1343, 0
  %1354 = vmatprep.subr.bf16.mxu0 0
  %1355 = vmatpush1.bf16.msra.mxu0 0
  %1356 = vmatprep.subr.bf16.mxu0 0
  %1357 = vmatpush1.bf16.msra.mxu0 0
  %1358 = vmatprep.subr.bf16.mxu0 0
  %1359 = vmatpush1.bf16.msra.mxu0 0
  %1360 = vmatprep.subr.bf16.mxu0 0
  %1361 = vmatpush1.bf16.msra.mxu0 0
  %1362 = vmatprep.subr.bf16.mxu0 0
  %1363 = vmatpush1.bf16.msra.mxu0 0
  %1364 = vmatprep.subr.bf16.mxu0 0
  %1365 = vmatpush1.bf16.msra.mxu0 %v1352
  %1366 = vmatprep.subr.bf16.mxu0 0
  %1367 = vmatpush1.bf16.msra.mxu0 %v1342
  %1368 = vmatprep.subr.bf16.mxu0 0
  %1369 = vmatpush1.bf16.msra.mxu0 %v1341
  %1370 = vmatprep.subr.bf16.mxu0 0
  %1371 = vmatpush2.bf16.msra.mxu0 0
  %1372 = vmatprep.subr.bf16.mxu0 0
  %1373 = vmatpush2.bf16.msra.mxu0 0
  %1374 = vmatprep.subr.bf16.mxu0 0
  %1375 = vmatpush2.bf16.msra.mxu0 0
  %1376 = vmatprep.subr.bf16.mxu0 0
  %1377 = vmatpush2.bf16.msra.mxu0 0
  %1378 = vmatprep.subr.bf16.mxu0 0
  %1379 = vmatpush2.bf16.msra.mxu0 0
  %1380 = vmatprep.subr.bf16.mxu0 0
  %1381 = vmatpush2.bf16.msra.mxu0 0
  %1382 = vmatprep.subr.bf16.mxu0 0
  %1383 = vmatpush2.bf16.msra.mxu0 0
  %1384 = vmatprep.subr.bf16.mxu0 0
  %1385 = vmatpush2.bf16.msra.mxu0 0
  %1386 = vmatprep.mubr.bf16.mxu0 0
  %1387 = vmatmul.mubr.bf16.gmra.mxu0 %v1348
  %v1388 = vpop.f32.mrf.mxu0
  %v1389 = vadd.f32 0.0, %v1388
  %v1390 = vpop.f32.mrf.mxu0
  %v1391 = vpop.f32.mrf.mxu0
  %v1392 = vpop.f32.mrf.mxu0
  %1393 = vdwg.mxu0
  %v1399 = vunpack.c.l.b16 %v1319
  %v1400 = vunpack.c.l.b16 %v1320
  %v1401 = vunpack.c.l.b16 %v1321
  %v1402 = vunpack.c.l.b16 %v1322
  %v1403 = vunpack.c.l.b16 %v1323
  %v1404 = vpack.c.b16 %v1400, %v1399
  %v1405 = vpack.c.b16 %v1402, %v1401
  %v1406 = vpack.c.b16 %v1403, %v1403
  %v1410 = vsel %vm1346, %v1317, 0
  %v1413 = vsel %vm1350, %v1406, 0
  %1415 = vmatprep.subr.bf16.mxu0 0
  %1416 = vmatpush1.bf16.msra.mxu0 0
  %1417 = vmatprep.subr.bf16.mxu0 0
  %1418 = vmatpush1.bf16.msra.mxu0 0
  %1419 = vmatprep.subr.bf16.mxu0 0
  %1420 = vmatpush1.bf16.msra.mxu0 0
  %1421 = vmatprep.subr.bf16.mxu0 0
  %1422 = vmatpush1.bf16.msra.mxu0 0
  %1423 = vmatprep.subr.bf16.mxu0 0
  %1424 = vmatpush1.bf16.msra.mxu0 0
  %1425 = vmatprep.subr.bf16.mxu0 0
  %1426 = vmatpush1.bf16.msra.mxu0 %v1413
  %1427 = vmatprep.subr.bf16.mxu0 0
  %1428 = vmatpush1.bf16.msra.mxu0 %v1405
  %1429 = vmatprep.subr.bf16.mxu0 0
  %1430 = vmatpush1.bf16.msra.mxu0 %v1404
  %1431 = vmatprep.subr.bf16.mxu0 0
  %1432 = vmatpush2.bf16.msra.mxu0 0
  %1433 = vmatprep.subr.bf16.mxu0 0
  %1434 = vmatpush2.bf16.msra.mxu0 0
  %1435 = vmatprep.subr.bf16.mxu0 0
  %1436 = vmatpush2.bf16.msra.mxu0 0
  %1437 = vmatprep.subr.bf16.mxu0 0
  %1438 = vmatpush2.bf16.msra.mxu0 0
  %1439 = vmatprep.subr.bf16.mxu0 0
  %1440 = vmatpush2.bf16.msra.mxu0 0
  %1441 = vmatprep.subr.bf16.mxu0 0
  %1442 = vmatpush2.bf16.msra.mxu0 0
  %1443 = vmatprep.subr.bf16.mxu0 0
  %1444 = vmatpush2.bf16.msra.mxu0 0
  %1445 = vmatprep.subr.bf16.mxu0 0
  %1446 = vmatpush2.bf16.msra.mxu0 0
  %1447 = vmatprep.mubr.bf16.mxu0 0
  %1448 = vmatmul.mubr.bf16.gmra.mxu0 %v1410
  %v1449 = vpop.f32.mrf.mxu0
  %v1450 = vadd.f32 %v1389, %v1449
  %v1451 = vpop.f32.mrf.mxu0
  %v1452 = vpop.f32.mrf.mxu0
  %v1453 = vpop.f32.mrf.mxu0
  %1454 = vdwg.mxu0
  %v1455 = vld [vmem:[%s6 + $0x28] sm:$0xf]
  %v1456 = vld [vmem:[%s6 + $0x2c] sm:$0xf]
  %v1457 = vld [vmem:[%s6 + $0x30] sm:$0xf]
  %v1458 = vld [vmem:[%s6 + $0x34] sm:$0xf]
  %v1459 = vld [vmem:[%s6 + $0x38] sm:$0xf]
  %v1465 = vunpack.c.l.b16 %v1455
  %v1466 = vunpack.c.l.b16 %v1456
  %v1467 = vunpack.c.l.b16 %v1457
  %v1468 = vunpack.c.l.b16 %v1458
  %v1469 = vunpack.c.l.b16 %v1459
  %v1470 = vpack.c.b16 %v1466, %v1465
  %v1471 = vpack.c.b16 %v1468, %v1467
  %v1472 = vpack.c.b16 %v1469, %v1469
  %v1476 = vsel %vm1346, %v1318, 0
  %v1479 = vsel %vm1350, %v1472, 0
  %1481 = vmatprep.subr.bf16.mxu0 0
  %1482 = vmatpush1.bf16.msra.mxu0 0
  %1483 = vmatprep.subr.bf16.mxu0 0
  %1484 = vmatpush1.bf16.msra.mxu0 0
  %1485 = vmatprep.subr.bf16.mxu0 0
  %1486 = vmatpush1.bf16.msra.mxu0 0
  %1487 = vmatprep.subr.bf16.mxu0 0
  %1488 = vmatpush1.bf16.msra.mxu0 0
  %1489 = vmatprep.subr.bf16.mxu0 0
  %1490 = vmatpush1.bf16.msra.mxu0 0
  %1491 = vmatprep.subr.bf16.mxu0 0
  %1492 = vmatpush1.bf16.msra.mxu0 %v1479
  %1493 = vmatprep.subr.bf16.mxu0 0
  %1494 = vmatpush1.bf16.msra.mxu0 %v1471
  %1495 = vmatprep.subr.bf16.mxu0 0
  %1496 = vmatpush1.bf16.msra.mxu0 %v1470
  %1497 = vmatprep.subr.bf16.mxu0 0
  %1498 = vmatpush2.bf16.msra.mxu0 0
  %1499 = vmatprep.subr.bf16.mxu0 0
  %1500 = vmatpush2.bf16.msra.mxu0 0
  %1501 = vmatprep.subr.bf16.mxu0 0
  %1502 = vmatpush2.bf16.msra.mxu0 0
  %1503 = vmatprep.subr.bf16.mxu0 0
  %1504 = vmatpush2.bf16.msra.mxu0 0
  %1505 = vmatprep.subr.bf16.mxu0 0
  %1506 = vmatpush2.bf16.msra.mxu0 0
  %1507 = vmatprep.subr.bf16.mxu0 0
  %1508 = vmatpush2.bf16.msra.mxu0 0
  %1509 = vmatprep.subr.bf16.mxu0 0
  %1510 = vmatpush2.bf16.msra.mxu0 0
  %1511 = vmatprep.subr.bf16.mxu0 0
  %1512 = vmatpush2.bf16.msra.mxu0 0
  %1513 = vmatprep.mubr.bf16.mxu0 0
  %1514 = vmatmul.mubr.bf16.gmra.mxu0 %v1476
  %v1515 = vpop.f32.mrf.mxu0
  %v1516 = vadd.f32 0.0, %v1515
  %v1517 = vpop.f32.mrf.mxu0
  %v1518 = vpop.f32.mrf.mxu0
  %v1519 = vpop.f32.mrf.mxu0
  %1520 = vdwg.mxu0
  %v1521 = vadd.f32 %v1450, %v1516
  %v1522 = vld [vmem:[%s6 + $0x3c] sm:$0xf]
  %v1523 = vld [vmem:[%s6 + $0x40] sm:$0xf]
  %v1524 = vld [vmem:[%s6 + $0x44] sm:$0xf]
  %v1525 = vld [vmem:[%s6 + $0x48] sm:$0xf]
  %v1526 = vld [vmem:[%s6 + $0x4c] sm:$0xf]
  %v1528 = vrot.slane %v1318, 4
  %v1534 = vunpack.c.l.b16 %v1522
  %v1535 = vunpack.c.l.b16 %v1523
  %v1536 = vunpack.c.l.b16 %v1524
  %v1537 = vunpack.c.l.b16 %v1525
  %v1538 = vunpack.c.l.b16 %v1526
  %v1539 = vpack.c.b16 %v1535, %v1534
  %v1540 = vpack.c.b16 %v1537, %v1536
  %v1541 = vpack.c.b16 %v1538, %v1538
  %v1545 = vsel %vm1346, %v1528, 0
  %v1548 = vsel %vm1350, %v1541, 0
  %1550 = vmatprep.subr.bf16.mxu0 0
  %1551 = vmatpush1.bf16.msra.mxu0 0
  %1552 = vmatprep.subr.bf16.mxu0 0
  %1553 = vmatpush1.bf16.msra.mxu0 0
  %1554 = vmatprep.subr.bf16.mxu0 0
  %1555 = vmatpush1.bf16.msra.mxu0 0
  %1556 = vmatprep.subr.bf16.mxu0 0
  %1557 = vmatpush1.bf16.msra.mxu0 0
  %1558 = vmatprep.subr.bf16.mxu0 0
  %1559 = vmatpush1.bf16.msra.mxu0 0
  %1560 = vmatprep.subr.bf16.mxu0 0
  %1561 = vmatpush1.bf16.msra.mxu0 %v1548
  %1562 = vmatprep.subr.bf16.mxu0 0
  %1563 = vmatpush1.bf16.msra.mxu0 %v1540
  %1564 = vmatprep.subr.bf16.mxu0 0
  %1565 = vmatpush1.bf16.msra.mxu0 %v1539
  %1566 = vmatprep.subr.bf16.mxu0 0
  %1567 = vmatpush2.bf16.msra.mxu0 0
  %1568 = vmatprep.subr.bf16.mxu0 0
  %1569 = vmatpush2.bf16.msra.mxu0 0
  %1570 = vmatprep.subr.bf16.mxu0 0
  %1571 = vmatpush2.bf16.msra.mxu0 0
  %1572 = vmatprep.subr.bf16.mxu0 0
  %1573 = vmatpush2.bf16.msra.mxu0 0
  %1574 = vmatprep.subr.bf16.mxu0 0
  %1575 = vmatpush2.bf16.msra.mxu0 0
  %1576 = vmatprep.subr.bf16.mxu0 0
  %1577 = vmatpush2.bf16.msra.mxu0 0
  %1578 = vmatprep.subr.bf16.mxu0 0
  %1579 = vmatpush2.bf16.msra.mxu0 0
  %1580 = vmatprep.subr.bf16.mxu0 0
  %1581 = vmatpush2.bf16.msra.mxu0 0
  %1582 = vmatprep.mubr.bf16.mxu0 0
  %1583 = vmatmul.mubr.bf16.gmra.mxu0 %v1545
  %v1584 = vpop.f32.mrf.mxu0
  %v1585 = vadd.f32 0.0, %v1584
  %v1586 = vpop.f32.mrf.mxu0
  %v1587 = vpop.f32.mrf.mxu0
  %v1588 = vpop.f32.mrf.mxu0
  %1589 = vdwg.mxu0
  %v1590 = vadd.f32 %v1521, %v1585
  %v1591 = vld [vmem:[%s7] sm:$0x1]
  %v1593 = vlaneseq
  %v1594 = vshrl.u32 %v1593, 7
  %v1595 = vsub.s32 0, %v1594
  %v1596 = vrot.slane %v1591, %v1595
  %v1598 = vadd.f32 %v1590, %v1596
  %v1599 = vmax.f32 %v1598, 0.0
  %v1600 = vpack.c.bf16 %v1599, %v1599
  %v1601 = vld [vmem:[%s8] sm:$0xf]
  %v1602 = vld [vmem:[%s8 + $0x4] sm:$0xf]
  %v1603 = vld [vmem:[%s8 + $0x8] sm:$0xf]
  %v1604 = vld [vmem:[%s8 + $0xc] sm:$0xf]
  %v1605 = vld [vmem:[%s8 + $0x10] sm:$0xf]
  %v1606 = vld [vmem:[%s8 + $0x14] sm:$0xf]
  %v1607 = vld [vmem:[%s8 + $0x18] sm:$0xf]
  %v1608 = vld [vmem:[%s8 + $0x1c] sm:$0xf]
  %v1609 = vld [vmem:[%s8 + $0x20] sm:$0xf]
  %v1610 = vld [vmem:[%s8 + $0x24] sm:$0xf]
  %v1611 = vld [vmem:[%s8 + $0x28] sm:$0xf]
  %v1612 = vld [vmem:[%s8 + $0x2c] sm:$0xf]
  %v1613 = vld [vmem:[%s8 + $0x30] sm:$0xf]
  %v1614 = vld [vmem:[%s8 + $0x34] sm:$0xf]
  %v1615 = vld [vmem:[%s8 + $0x38] sm:$0xf]
  %v1616 = vld [vmem:[%s8 + $0x3c] sm:$0xf]
  %v1617 = vld [vmem:[%s9] sm:$0x1]
  %v1619 = vlaneseq
  %v1620 = vshrl.u32 %v1619, 7
  %v1621 = vsub.s32 0, %v1620
  %v1622 = vrot.slane %v1617, %v1621
  %v1640 = vunpack.c.l.b16 %v1601
  %v1641 = vunpack.c.l.b16 %v1602
  %v1642 = vunpack.c.l.b16 %v1603
  %v1643 = vunpack.c.l.b16 %v1604
  %v1644 = vunpack.c.l.b16 %v1605
  %v1645 = vunpack.c.l.b16 %v1606
  %v1646 = vunpack.c.l.b16 %v1607
  %v1647 = vunpack.c.l.b16 %v1608
  %v1648 = vunpack.c.l.b16 %v1609
  %v1649 = vunpack.c.l.b16 %v1610
  %v1650 = vunpack.c.l.b16 %v1611
  %v1651 = vunpack.c.l.b16 %v1612
  %v1652 = vunpack.c.l.b16 %v1613
  %v1653 = vunpack.c.l.b16 %v1614
  %v1654 = vunpack.c.l.b16 %v1615
  %v1655 = vunpack.c.l.b16 %v1616
  %v1656 = vpack.c.b16 %v1641, %v1640
  %v1657 = vpack.c.b16 %v1643, %v1642
  %v1658 = vpack.c.b16 %v1645, %v1644
  %v1659 = vpack.c.b16 %v1647, %v1646
  %v1660 = vpack.c.b16 %v1649, %v1648
  %v1661 = vpack.c.b16 %v1651, %v1650
  %v1662 = vpack.c.b16 %v1653, %v1652
  %v1663 = vpack.c.b16 %v1655, %v1654
  %1672 = vmatprep.subr.bf16.mxu0 0
  %1673 = vmatpush1.bf16.msra.mxu0 %v1663
  %1674 = vmatprep.subr.bf16.mxu0 0
  %1675 = vmatpush1.bf16.msra.mxu0 %v1662
  %1676 = vmatprep.subr.bf16.mxu0 0
  %1677 = vmatpush1.bf16.msra.mxu0 %v1661
  %1678 = vmatprep.subr.bf16.mxu0 0
  %1679 = vmatpush1.bf16.msra.mxu0 %v1660
  %1680 = vmatprep.subr.bf16.mxu0 0
  %1681 = vmatpush1.bf16.msra.mxu0 %v1659
  %1682 = vmatprep.subr.bf16.mxu0 0
  %1683 = vmatpush1.bf16.msra.mxu0 %v1658
  %1684 = vmatprep.subr.bf16.mxu0 0
  %1685 = vmatpush1.bf16.msra.mxu0 %v1657
  %1686 = vmatprep.subr.bf16.mxu0 0
  %1687 = vmatpush1.bf16.msra.mxu0 %v1656
  %1688 = vmatprep.subr.bf16.mxu0 0
  %1689 = vmatpush2.bf16.msra.mxu0 0
  %1690 = vmatprep.subr.bf16.mxu0 0
  %1691 = vmatpush2.bf16.msra.mxu0 0
  %1692 = vmatprep.subr.bf16.mxu0 0
  %1693 = vmatpush2.bf16.msra.mxu0 0
  %1694 = vmatprep.subr.bf16.mxu0 0
  %1695 = vmatpush2.bf16.msra.mxu0 0
  %1696 = vmatprep.subr.bf16.mxu0 0
  %1697 = vmatpush2.bf16.msra.mxu0 0
  %1698 = vmatprep.subr.bf16.mxu0 0
  %1699 = vmatpush2.bf16.msra.mxu0 0
  %1700 = vmatprep.subr.bf16.mxu0 0
  %1701 = vmatpush2.bf16.msra.mxu0 0
  %1702 = vmatprep.subr.bf16.mxu0 0
  %1703 = vmatpush2.bf16.msra.mxu0 0
  %1704 = vmatprep.mubr.bf16.mxu0 0
  %1705 = vmatmul.mubr.bf16.gmra.mxu0 %v1600
  %v1706 = vpop.f32.mrf.mxu0
  %v1707 = vadd.f32 %v1622, %v1706
  %v1708 = vpop.f32.mrf.mxu0
  %v1709 = vpop.f32.mrf.mxu0
  %v1710 = vpop.f32.mrf.mxu0
  %1711 = vdwg.mxu0
  %1712 = vst [vmem:[%s10] sm:$0xff] %v1707
  // Predicated region
  $region42: #{_net_forward_packed.1} parent=0 // pred_check
    _
  $region43: #{_net_forward_packed.1} parent=0 // pred_check_branch
    %1714 = sbr.rel (0) target = $region45
  $region44: #{_net_forward_packed.1} parent=0 // pred_region
    _
  $region45: #{_net_forward_packed.1} parent=0 // pred_fallthru
    _
  // Predicated region
  $region46: #{_net_forward_packed.1} parent=0 // pred_check
    _
  $region47: #{_net_forward_packed.1} parent=0 // pred_check_branch
    %1716 = sbr.rel (0) target = $region49
  $region48: #{_net_forward_packed.1} parent=0 // pred_region
    _
  $region49: #{_net_forward_packed.1} parent=0 // pred_fallthru
    _

</llo_original>
